<compile_context>
chip_gen: v6e
topology: v6e:2x2x1
jax: 0.10.0
libtpu: 0.0.40
codegen_flags: <defaults>
</compile_context>

<pallas_src>
import functools

import jax
import jax.numpy as jnp
from jax.experimental import pallas as pl
from jax.experimental.pallas import tpu as pltpu


def _compute_gated(x_img, wc, bc, xstack_ref, *, P2, Lp, Cin, Cout):
    """ELU(conv3x3(x)+b_f) * sigmoid(conv1x1(x)+b_m) for one padded, flattened image.

    x_img:      (Cin, Lp)        padded image, pixels on lanes (row stride P2=W+2).
    wc:         (2*Cout, 9*Cin)  fused tap weights; mask rows only in centre-tap cols.
    bc:         (2*Cout, 1)      fused biases (f32).
    xstack_ref: (9*Cin, Lp)      VMEM scratch for the 9 shifted tap slabs.
    returns     (Cout, Lp)       gated activations, f32 (junk in invalid lanes).
    """
    # Build the 9 constant-offset tap slabs (pltpu.roll = XLU slot, overlaps with
    # the MXU), then contract against the fused weight in ONE dot with K = 9*Cin.
    for kh in range(3):
        for kw in range(3):
            off = kh * P2 + kw
            k = kh * 3 + kw
            xs = x_img if off == 0 else pltpu.roll(x_img, shift=Lp - off, axis=1)
            xstack_ref[k * Cin:(k + 1) * Cin, :] = xs
    acc = jnp.dot(wc, xstack_ref[...], preferred_element_type=jnp.float32)
    acc = acc + bc                                           # (2*Cout, Lp), f32

    feat = acc[:Cout, :]
    mval = acc[Cout:, :]
    # ELU (alpha=1).  exp(min(f,0)) - 1 (vs expm1): ~1e-7 abs diff, safe lowering.
    feat = jnp.where(feat > 0.0, feat, jnp.exp(jnp.minimum(feat, 0.0)) - 1.0)
    # Exact sigmoid (approx=False) for parity with the PyTorch reference; the
    # reciprocal still runs on the EUP slot.
    sig = pl.reciprocal(1.0 + jnp.exp(-mval), approx=False)
    return feat * sig                                        # (Cout, Lp)


def _stats_kernel(x_ref, wc_ref, bc_ref, vmask_ref, stats_ref, xstack_ref, *,
                  P2, Lp, Cin, Cout, Nb):
    # x_ref:     (Nb, Cin, Lp)   padded images
    # stats_ref: (Nb, Cout, 2)   per-image per-channel [sum, sum-of-squares]
    wc = wc_ref[...]
    bc = bc_ref[...]
    vmask = vmask_ref[...]
    for b in range(Nb):
        gated = _compute_gated(x_ref[b], wc, bc, xstack_ref,
                               P2=P2, Lp=Lp, Cin=Cin, Cout=Cout)
        gv = gated * vmask                                   # zero pad/junk lanes
        stats_ref[b, :, 0:1] = jnp.sum(gv, axis=1, keepdims=True)
        stats_ref[b, :, 1:2] = jnp.sum(gv * gv, axis=1, keepdims=True)


def _apply_kernel(x_ref, wc_ref, bc_ref, scale_ref, shift_ref, out_ref,
                  xstack_ref, y_ref, *, P2, Lp, Cin, Cout, H, W, Nb):
    # Recompute gated (bit-identical to pass 1), apply the BatchNorm affine, and
    # write the CROPPED dense NCHW-flat output (N, Cout, H*W) directly — no extra
    # XLA crop pass over HBM afterwards.
    wc = wc_ref[...]
    bc = bc_ref[...]
    scale = scale_ref[...]
    shift = shift_ref[...]
    for b in range(Nb):
        gated = _compute_gated(x_ref[b], wc, bc, xstack_ref,
                               P2=P2, Lp=Lp, Cin=Cin, Cout=Cout)
        y_ref[...] = gated * scale + shift                   # (Cout, Lp) staged in VMEM
        # Fused crop/compaction: valid row r lives at lanes [r*P2, r*P2+W) of the
        # padded layout and goes to lanes [r*W, (r+1)*W) of the dense output.
        for r in range(H):
            out_ref[b, :, r * W:(r + 1) * W] = y_ref[:, r * P2:r * P2 + W]


@functools.partial(jax.jit, static_argnames=("dot_dtype", "images_per_step"))
def gated_block_pw(x_nchw, w_f, b_f, w_m, b_m, gamma, beta, *,
                   dot_dtype=jnp.float32, images_per_step=1):
    """x_nchw: [N, Cin, H, W]; w_f: [Cout, Cin, 3, 3]; w_m: [Cout, Cin, 1, 1]."""
    N, Cin, H, W = x_nchw.shape
    Cout = w_f.shape[0]
    P2 = W + 2
    Pp = (H + 2) * P2
    Lp = pl.cdiv(Pp, 128) * 128          # 128-pad the flat lane axis (lane-dense I/O)
    Nb = images_per_step
    assert N % Nb == 0, "images_per_step must divide the batch"

    # Zero-padded, flattened, lane-padded input. Cast at the dot inputs only
    # (dot_dtype=bf16 on v6e/v7x halves DMA bytes; epilogue stays f32).
    x32 = x_nchw.astype(jnp.float32)
    xp = jnp.pad(x32, ((0, 0), (0, 0), (1, 1), (1, 1)))      # (N, Cin, H+2, W+2)
    xflat = jnp.pad(xp.reshape(N, Cin, Pp),
                    ((0, 0), (0, 0), (0, Lp - Pp))).astype(dot_dtype)

    # Fused weights: rows [0, Cout) = conv3x3 (column (kh*3+kw)*Cin + ci),
    # rows [Cout, 2*Cout) = conv1x1, non-zero only in the centre-tap columns.
    wc_feat = jnp.transpose(w_f, (0, 2, 3, 1)).reshape(Cout, 9 * Cin)
    wc_mask = jnp.zeros((Cout, 9 * Cin), jnp.float32)
    wc_mask = wc_mask.at[:, 4 * Cin:5 * Cin].set(w_m[:, :, 0, 0].astype(jnp.float32))
    wc = jnp.concatenate([wc_feat.astype(jnp.float32), wc_mask], axis=0).astype(dot_dtype)
    bc = jnp.concatenate([b_f, b_m]).astype(jnp.float32).reshape(2 * Cout, 1)

    # Valid-output mask over the padded flat grid (q = r*(W+2) + c).
    q = jnp.arange(Lp)
    vmask = (((q // P2) < H) & ((q % P2) < W)).astype(jnp.float32).reshape(1, Lp)

    cparams = pltpu.CompilerParams(
        dimension_semantics=("parallel",),
        # Safe on every generation (v7x physical VMEM is 64 MiB/TC); raise towards
        # ~100 MiB on v5e/v6e when using larger spatial tiles / images_per_step.
        vmem_limit_bytes=48 * 1024 * 1024)

    # ---------------- Pass 1: per-image per-channel sum / sumsq only ----------------
    stats = pl.pallas_call(
        functools.partial(_stats_kernel, P2=P2, Lp=Lp, Cin=Cin, Cout=Cout, Nb=Nb),
        out_shape=jax.ShapeDtypeStruct((N, Cout, 2), jnp.float32),
        grid=(N // Nb,),
        in_specs=[
            pl.BlockSpec((Nb, Cin, Lp), lambda n: (n, 0, 0)),           # x block
            pl.BlockSpec((2 * Cout, 9 * Cin), lambda n: (0, 0)),        # fused weights
            pl.BlockSpec((2 * Cout, 1), lambda n: (0, 0)),              # fused biases
            pl.BlockSpec((1, Lp), lambda n: (0, 0)),                    # valid mask
        ],
        out_specs=pl.BlockSpec((Nb, Cout, 2), lambda n: (n, 0, 0)),     # merged stats
        scratch_shapes=[pltpu.VMEM((9 * Cin, Lp), dot_dtype)],
        compiler_params=cparams,
    )(xflat, wc, bc, vmask)

    # BatchNorm finalize (training-mode batch stats, biased variance, eps=1e-5).
    cnt = jnp.float32(N * H * W)
    g32 = gamma.astype(jnp.float32)
    mean = jnp.sum(stats[:, :, 0], axis=0) / cnt
    var = jnp.maximum(jnp.sum(stats[:, :, 1], axis=0) / cnt - mean * mean, 0.0)
    inv = jax.lax.rsqrt(var + 1e-5)
    scale = (g32 * inv).reshape(Cout, 1)
    shift = (beta.astype(jnp.float32) - mean * g32 * inv).reshape(Cout, 1)

    # ------------- Pass 2: recompute gated, apply BN affine, fused crop -------------
    out_flat = pl.pallas_call(
        functools.partial(_apply_kernel, P2=P2, Lp=Lp, Cin=Cin, Cout=Cout,
                          H=H, W=W, Nb=Nb),
        out_shape=jax.ShapeDtypeStruct((N, Cout, H * W), jnp.float32),
        grid=(N // Nb,),
        in_specs=[
            pl.BlockSpec((Nb, Cin, Lp), lambda n: (n, 0, 0)),
            pl.BlockSpec((2 * Cout, 9 * Cin), lambda n: (0, 0)),
            pl.BlockSpec((2 * Cout, 1), lambda n: (0, 0)),
            pl.BlockSpec((Cout, 1), lambda n: (0, 0)),                  # scale
            pl.BlockSpec((Cout, 1), lambda n: (0, 0)),                  # shift
        ],
        out_specs=pl.BlockSpec((Nb, Cout, H * W), lambda n: (n, 0, 0)),
        scratch_shapes=[pltpu.VMEM((9 * Cin, Lp), dot_dtype),
                        pltpu.VMEM((Cout, Lp), jnp.float32)],
        compiler_params=cparams,
    )(xflat, wc, bc, scale, shift)

    # Free metadata-only reshape (pure split of the last dim), already NCHW.
    return out_flat.reshape(N, Cout, H, W)


def _reference(x, w_f, b_f, w_m, b_m, gamma, beta):
    """Pure-JAX (XLA) reference mirroring the PyTorch module forward (f32)."""
    hp = jax.lax.Precision.HIGHEST
    feat = jax.lax.conv_general_dilated(
        x, w_f, (1, 1), ((1, 1), (1, 1)),
        dimension_numbers=("NCHW", "OIHW", "NCHW"),
        precision=hp) + b_f.reshape(1, -1, 1, 1)
    feat = jnp.where(feat > 0, feat, jnp.expm1(jnp.minimum(feat, 0.0)))   # ELU
    m = jax.lax.conv_general_dilated(
        x, w_m, (1, 1), ((0, 0), (0, 0)),
        dimension_numbers=("NCHW", "OIHW", "NCHW"),
        precision=hp) + b_m.reshape(1, -1, 1, 1)
    g = feat * jax.nn.sigmoid(m)
    mean = jnp.mean(g, axis=(0, 2, 3), keepdims=True)
    var = jnp.mean((g - mean) ** 2, axis=(0, 2, 3), keepdims=True)        # biased
    y = (g - mean) * jax.lax.rsqrt(var + 1e-5)
    return y * gamma.reshape(1, -1, 1, 1) + beta.reshape(1, -1, 1, 1)


if __name__ == "__main__":
    N, Cin, Cout, H, W = 2, 4, 8, 16, 16

    key = jax.random.PRNGKey(0)
    kx, kwf, kbf, kwm, kbm = jax.random.split(key, 5)

    x = jax.random.normal(kx, (N, Cin, H, W), dtype=jnp.float32)
    w_f = jax.random.normal(kwf, (Cout, Cin, 3, 3), dtype=jnp.float32) * 0.1
    b_f = jax.random.normal(kbf, (Cout,), dtype=jnp.float32) * 0.1
    w_m = jax.random.normal(kwm, (Cout, Cin, 1, 1), dtype=jnp.float32) * 0.1
    b_m = jax.random.normal(kbm, (Cout,), dtype=jnp.float32) * 0.1
    gamma = jnp.ones((Cout,), dtype=jnp.float32)   # BatchNorm2d affine init
    beta = jnp.zeros((Cout,), dtype=jnp.float32)

    out = gated_block_pw(x, w_f, b_f, w_m, b_m, gamma, beta)
    out = jax.block_until_ready(out)
    assert out.shape == (N, Cout, H, W)

    # Sigmoid/ELU/BN are exact now; the only divergence source vs. the HIGHEST-
    # precision XLA reference is the MXU's default-precision f32 matmul input
    # rounding, which stays well inside this bound for these magnitudes.
    ref = _reference(x, w_f, b_f, w_m, b_m, gamma, beta)
    err = float(jnp.max(jnp.abs(out - ref)))
    assert err < 5e-2, f"max abs err vs reference: {err}"

    print("KERNEL_OK")
</pallas_src>

<mosaic_0001>
module attributes {stable_mosaic.version = 11 : i64} {
  func.func @_stats_kernel(%arg0: i32, %arg1: memref<1x4x384xf32, #tpu.memory_space<vmem>>, %arg2: memref<16x36xf32, #tpu.memory_space<vmem>>, %arg3: memref<16x1xf32, #tpu.memory_space<vmem>>, %arg4: memref<1x384xf32, #tpu.memory_space<vmem>>, %arg5: memref<1x8x2xf32, #tpu.memory_space<vmem>>, %arg6: memref<36x384xf32, #tpu.memory_space<vmem>>) attributes {dimension_semantics = [#tpu.dimension_semantics<parallel>], iteration_bounds = array<i64: 2>, scalar_prefetch = 0 : i64, scratch_operands = 1 : i64, tpu.core_type = #tpu.core_type<tc>, window_params = [{transform_indices = @transform_0, window_bounds = array<i64: 1, 4, 384>}, {pipeline_mode = #tpu.pipeline_mode<synchronous>, transform_indices = @transform_1, window_bounds = array<i64: 16, 36>}, {pipeline_mode = #tpu.pipeline_mode<synchronous>, transform_indices = @transform_2, window_bounds = array<i64: 16, 1>}, {pipeline_mode = #tpu.pipeline_mode<synchronous>, transform_indices = @transform_3, window_bounds = array<i64: 1, 384>}, {transform_indices = @transform_4, window_bounds = array<i64: 1, 8, 2>}]} {
    %c0 = arith.constant 0 : index
    %c0_0 = arith.constant 0 : index
    %0 = vector.load %arg2[%c0, %c0_0] : memref<16x36xf32, #tpu.memory_space<vmem>>, vector<16x36xf32>
    %c0_1 = arith.constant 0 : index
    %c0_2 = arith.constant 0 : index
    %1 = vector.load %arg3[%c0_1, %c0_2] : memref<16x1xf32, #tpu.memory_space<vmem>>, vector<16x1xf32>
    %c0_3 = arith.constant 0 : index
    %c0_4 = arith.constant 0 : index
    %2 = vector.load %arg4[%c0_3, %c0_4] : memref<1x384xf32, #tpu.memory_space<vmem>>, vector<1x384xf32>
    %c0_5 = arith.constant 0 : index
    %c0_6 = arith.constant 0 : index
    %c0_7 = arith.constant 0 : index
    %3 = vector.load %arg1[%c0_5, %c0_6, %c0_7] : memref<1x4x384xf32, #tpu.memory_space<vmem>>, vector<1x4x384xf32>
    %4 = vector.shape_cast %3 : vector<1x4x384xf32> to vector<4x384xf32>
    %c0_8 = arith.constant 0 : index
    %c0_9 = arith.constant 0 : index
    %5 = vector.load %arg6[%c0_8, %c0_9] : memref<36x384xf32, #tpu.memory_space<vmem>>, vector<4x384xf32>
    tpu.vector_store %arg6[%c0_8, %c0_9], %4 {strides = array<i32>} : memref<36x384xf32, #tpu.memory_space<vmem>>, vector<4x384xf32>,
    %c383_i32 = arith.constant 383 : i32
    %6 = tpu.dynamic_rotate %4 by %c383_i32 dim 1 : vector<4x384xf32>, i32 -> vector<4x384xf32>
    %c4 = arith.constant 4 : index
    %c0_10 = arith.constant 0 : index
    %7 = vector.load %arg6[%c4, %c0_10] : memref<36x384xf32, #tpu.memory_space<vmem>>, vector<4x384xf32>
    tpu.vector_store %arg6[%c4, %c0_10], %6 {strides = array<i32>} : memref<36x384xf32, #tpu.memory_space<vmem>>, vector<4x384xf32>,
    %c382_i32 = arith.constant 382 : i32
    %8 = tpu.dynamic_rotate %4 by %c382_i32 dim 1 : vector<4x384xf32>, i32 -> vector<4x384xf32>
    %c8 = arith.constant 8 : index
    %c0_11 = arith.constant 0 : index
    %9 = vector.load %arg6[%c8, %c0_11] : memref<36x384xf32, #tpu.memory_space<vmem>>, vector<4x384xf32>
    tpu.vector_store %arg6[%c8, %c0_11], %8 {strides = array<i32>} : memref<36x384xf32, #tpu.memory_space<vmem>>, vector<4x384xf32>,
    %c366_i32 = arith.constant 366 : i32
    %10 = tpu.dynamic_rotate %4 by %c366_i32 dim 1 : vector<4x384xf32>, i32 -> vector<4x384xf32>
    %c12 = arith.constant 12 : index
    %c0_12 = arith.constant 0 : index
    %11 = vector.load %arg6[%c12, %c0_12] : memref<36x384xf32, #tpu.memory_space<vmem>>, vector<4x384xf32>
    tpu.vector_store %arg6[%c12, %c0_12], %10 {strides = array<i32>} : memref<36x384xf32, #tpu.memory_space<vmem>>, vector<4x384xf32>,
    %c365_i32 = arith.constant 365 : i32
    %12 = tpu.dynamic_rotate %4 by %c365_i32 dim 1 : vector<4x384xf32>, i32 -> vector<4x384xf32>
    %c16 = arith.constant 16 : index
    %c0_13 = arith.constant 0 : index
    %13 = vector.load %arg6[%c16, %c0_13] : memref<36x384xf32, #tpu.memory_space<vmem>>, vector<4x384xf32>
    tpu.vector_store %arg6[%c16, %c0_13], %12 {strides = array<i32>} : memref<36x384xf32, #tpu.memory_space<vmem>>, vector<4x384xf32>,
    %c364_i32 = arith.constant 364 : i32
    %14 = tpu.dynamic_rotate %4 by %c364_i32 dim 1 : vector<4x384xf32>, i32 -> vector<4x384xf32>
    %c20 = arith.constant 20 : index
    %c0_14 = arith.constant 0 : index
    %15 = vector.load %arg6[%c20, %c0_14] : memref<36x384xf32, #tpu.memory_space<vmem>>, vector<4x384xf32>
    tpu.vector_store %arg6[%c20, %c0_14], %14 {strides = array<i32>} : memref<36x384xf32, #tpu.memory_space<vmem>>, vector<4x384xf32>,
    %c348_i32 = arith.constant 348 : i32
    %16 = tpu.dynamic_rotate %4 by %c348_i32 dim 1 : vector<4x384xf32>, i32 -> vector<4x384xf32>
    %c24 = arith.constant 24 : index
    %c0_15 = arith.constant 0 : index
    %17 = vector.load %arg6[%c24, %c0_15] : memref<36x384xf32, #tpu.memory_space<vmem>>, vector<4x384xf32>
    tpu.vector_store %arg6[%c24, %c0_15], %16 {strides = array<i32>} : memref<36x384xf32, #tpu.memory_space<vmem>>, vector<4x384xf32>,
    %c347_i32 = arith.constant 347 : i32
    %18 = tpu.dynamic_rotate %4 by %c347_i32 dim 1 : vector<4x384xf32>, i32 -> vector<4x384xf32>
    %c28 = arith.constant 28 : index
    %c0_16 = arith.constant 0 : index
    %19 = vector.load %arg6[%c28, %c0_16] : memref<36x384xf32, #tpu.memory_space<vmem>>, vector<4x384xf32>
    tpu.vector_store %arg6[%c28, %c0_16], %18 {strides = array<i32>} : memref<36x384xf32, #tpu.memory_space<vmem>>, vector<4x384xf32>,
    %c346_i32 = arith.constant 346 : i32
    %20 = tpu.dynamic_rotate %4 by %c346_i32 dim 1 : vector<4x384xf32>, i32 -> vector<4x384xf32>
    %c32 = arith.constant 32 : index
    %c0_17 = arith.constant 0 : index
    %21 = vector.load %arg6[%c32, %c0_17] : memref<36x384xf32, #tpu.memory_space<vmem>>, vector<4x384xf32>
    tpu.vector_store %arg6[%c32, %c0_17], %20 {strides = array<i32>} : memref<36x384xf32, #tpu.memory_space<vmem>>, vector<4x384xf32>,
    %c0_18 = arith.constant 0 : index
    %c0_19 = arith.constant 0 : index
    %22 = vector.load %arg6[%c0_18, %c0_19] : memref<36x384xf32, #tpu.memory_space<vmem>>, vector<36x384xf32>
    %cst = arith.constant dense<0.000000e+00> : vector<16x384xf32>
    %23 = tpu.matmul %0, %22, %cst {dimension_numbers = #tpu.dot_dimension_numbers<[1], [0], [0], [1], [0, 0, 1, 1], [], []>} : vector<16x36xf32>, vector<36x384xf32>, vector<16x384xf32> -> vector<16x384xf32>
    %24 = vector.broadcast %1 : vector<16x1xf32> to vector<16x384xf32>
    %25 = arith.addf %23, %24 : vector<16x384xf32>
    %26 = vector.extract_strided_slice %25 {offsets = [0, 0], sizes = [8, 384], strides = [1, 1]} : vector<16x384xf32> to vector<8x384xf32>
    %27 = vector.extract_strided_slice %25 {offsets = [8, 0], sizes = [8, 384], strides = [1, 1]} : vector<16x384xf32> to vector<8x384xf32>
    %cst_20 = arith.constant 0.000000e+00 : f32
    %28 = vector.broadcast %cst_20 : f32 to vector<8x384xf32>
    %29 = arith.cmpf ogt, %26, %28 : vector<8x384xf32>
    %cst_21 = arith.constant 0.000000e+00 : f32
    %30 = vector.broadcast %cst_21 : f32 to vector<8x384xf32>
    %31 = arith.minimumf %26, %30 : vector<8x384xf32>
    %32 = math.exp %31 : vector<8x384xf32>
    %cst_22 = arith.constant 1.000000e+00 : f32
    %33 = vector.broadcast %cst_22 : f32 to vector<8x384xf32>
    %34 = arith.subf %32, %33 : vector<8x384xf32>
    %35 = arith.select %29, %26, %34 : vector<8x384xi1>, vector<8x384xf32>
    %cst_23 = arith.constant 0.000000e+00 : f32
    %36 = vector.broadcast %cst_23 : f32 to vector<8x384xf32>
    %37 = arith.subf %36, %27 : vector<8x384xf32>
    %38 = math.exp %37 : vector<8x384xf32>
    %cst_24 = arith.constant 1.000000e+00 : f32
    %39 = vector.broadcast %cst_24 : f32 to vector<8x384xf32>
    %40 = arith.addf %39, %38 : vector<8x384xf32>
    %41 = tpu.reciprocal %40 : vector<8x384xf32> -> vector<8x384xf32>
    %42 = arith.mulf %35, %41 : vector<8x384xf32>
    %43 = vector.broadcast %2 : vector<1x384xf32> to vector<8x384xf32>
    %44 = arith.mulf %42, %43 : vector<8x384xf32>
    %cst_25 = arith.constant dense<0.000000e+00> : vector<8xf32>
    %45 = vector.multi_reduction <add>, %44, %cst_25 [1] : vector<8x384xf32> to vector<8xf32>
    %46 = vector.shape_cast %45 : vector<8xf32> to vector<8x1xf32>
    %c0_26 = arith.constant 0 : index
    %c0_27 = arith.constant 0 : index
    %c0_28 = arith.constant 0 : index
    %47 = vector.load %arg5[%c0_26, %c0_27, %c0_28] : memref<1x8x2xf32, #tpu.memory_space<vmem>>, vector<1x8x1xf32>
    %48 = vector.shape_cast %47 : vector<1x8x1xf32> to vector<8x1xf32>
    %49 = vector.shape_cast %46 : vector<8x1xf32> to vector<1x8x1xf32>
    tpu.vector_store %arg5[%c0_26, %c0_27, %c0_28], %49 {strides = array<i32>} : memref<1x8x2xf32, #tpu.memory_space<vmem>>, vector<1x8x1xf32>,
    %50 = arith.mulf %44, %44 : vector<8x384xf32>
    %cst_29 = arith.constant dense<0.000000e+00> : vector<8xf32>
    %51 = vector.multi_reduction <add>, %50, %cst_29 [1] : vector<8x384xf32> to vector<8xf32>
    %52 = vector.shape_cast %51 : vector<8xf32> to vector<8x1xf32>
    %c0_30 = arith.constant 0 : index
    %c0_31 = arith.constant 0 : index
    %c1 = arith.constant 1 : index
    %53 = vector.load %arg5[%c0_30, %c0_31, %c1] : memref<1x8x2xf32, #tpu.memory_space<vmem>>, vector<1x8x1xf32>
    %54 = vector.shape_cast %53 : vector<1x8x1xf32> to vector<8x1xf32>
    %55 = vector.shape_cast %52 : vector<8x1xf32> to vector<1x8x1xf32>
    tpu.vector_store %arg5[%c0_30, %c0_31, %c1], %55 {strides = array<i32>} : memref<1x8x2xf32, #tpu.memory_space<vmem>>, vector<1x8x1xf32>,
    return
  }
  func.func @transform_0(%arg0: i32) -> (i32, i32, i32) {
    %c0_i32 = arith.constant 0 : i32
    %c0_i32_0 = arith.constant 0 : i32
    %c0_i32_1 = arith.constant 0 : i32
    return %arg0, %c0_i32, %c0_i32_0 : i32, i32, i32
  }
  func.func @transform_1(%arg0: i32) -> (i32, i32) {
    %c0_i32 = arith.constant 0 : i32
    %c0_i32_0 = arith.constant 0 : i32
    %c0_i32_1 = arith.constant 0 : i32
    return %c0_i32, %c0_i32_0 : i32, i32
  }
  func.func @transform_2(%arg0: i32) -> (i32, i32) {
    %c0_i32 = arith.constant 0 : i32
    %c0_i32_0 = arith.constant 0 : i32
    %c0_i32_1 = arith.constant 0 : i32
    return %c0_i32, %c0_i32_0 : i32, i32
  }
  func.func @transform_3(%arg0: i32) -> (i32, i32) {
    %c0_i32 = arith.constant 0 : i32
    %c0_i32_0 = arith.constant 0 : i32
    %c0_i32_1 = arith.constant 0 : i32
    return %c0_i32, %c0_i32_0 : i32, i32
  }
  func.func @transform_4(%arg0: i32) -> (i32, i32, i32) {
    %c0_i32 = arith.constant 0 : i32
    %c0_i32_0 = arith.constant 0 : i32
    %c0_i32_1 = arith.constant 0 : i32
    return %arg0, %c0_i32, %c0_i32_0 : i32, i32, i32
  }
}

module attributes {stable_mosaic.version = 11 : i64} {
  func.func @_apply_kernel(%arg0: i32, %arg1: memref<1x4x384xf32, #tpu.memory_space<vmem>>, %arg2: memref<16x36xf32, #tpu.memory_space<vmem>>, %arg3: memref<16x1xf32, #tpu.memory_space<vmem>>, %arg4: memref<8x1xf32, #tpu.memory_space<vmem>>, %arg5: memref<8x1xf32, #tpu.memory_space<vmem>>, %arg6: memref<1x8x256xf32, #tpu.memory_space<vmem>>, %arg7: memref<36x384xf32, #tpu.memory_space<vmem>>, %arg8: memref<8x384xf32, #tpu.memory_space<vmem>>) attributes {dimension_semantics = [#tpu.dimension_semantics<parallel>], iteration_bounds = array<i64: 2>, scalar_prefetch = 0 : i64, scratch_operands = 2 : i64, tpu.core_type = #tpu.core_type<tc>, window_params = [{transform_indices = @transform_0, window_bounds = array<i64: 1, 4, 384>}, {pipeline_mode = #tpu.pipeline_mode<synchronous>, transform_indices = @transform_1, window_bounds = array<i64: 16, 36>}, {pipeline_mode = #tpu.pipeline_mode<synchronous>, transform_indices = @transform_2, window_bounds = array<i64: 16, 1>}, {pipeline_mode = #tpu.pipeline_mode<synchronous>, transform_indices = @transform_3, window_bounds = array<i64: 8, 1>}, {pipeline_mode = #tpu.pipeline_mode<synchronous>, transform_indices = @transform_4, window_bounds = array<i64: 8, 1>}, {transform_indices = @transform_5, window_bounds = array<i64: 1, 8, 256>}]} {
    %c0 = arith.constant 0 : index
    %c0_0 = arith.constant 0 : index
    %0 = vector.load %arg2[%c0, %c0_0] : memref<16x36xf32, #tpu.memory_space<vmem>>, vector<16x36xf32>
    %c0_1 = arith.constant 0 : index
    %c0_2 = arith.constant 0 : index
    %1 = vector.load %arg3[%c0_1, %c0_2] : memref<16x1xf32, #tpu.memory_space<vmem>>, vector<16x1xf32>
    %c0_3 = arith.constant 0 : index
    %c0_4 = arith.constant 0 : index
    %2 = vector.load %arg4[%c0_3, %c0_4] : memref<8x1xf32, #tpu.memory_space<vmem>>, vector<8x1xf32>
    %c0_5 = arith.constant 0 : index
    %c0_6 = arith.constant 0 : index
    %3 = vector.load %arg5[%c0_5, %c0_6] : memref<8x1xf32, #tpu.memory_space<vmem>>, vector<8x1xf32>
    %c0_7 = arith.constant 0 : index
    %c0_8 = arith.constant 0 : index
    %c0_9 = arith.constant 0 : index
    %4 = vector.load %arg1[%c0_7, %c0_8, %c0_9] : memref<1x4x384xf32, #tpu.memory_space<vmem>>, vector<1x4x384xf32>
    %5 = vector.shape_cast %4 : vector<1x4x384xf32> to vector<4x384xf32>
    %c0_10 = arith.constant 0 : index
    %c0_11 = arith.constant 0 : index
    %6 = vector.load %arg7[%c0_10, %c0_11] : memref<36x384xf32, #tpu.memory_space<vmem>>, vector<4x384xf32>
    tpu.vector_store %arg7[%c0_10, %c0_11], %5 {strides = array<i32>} : memref<36x384xf32, #tpu.memory_space<vmem>>, vector<4x384xf32>,
    %c383_i32 = arith.constant 383 : i32
    %7 = tpu.dynamic_rotate %5 by %c383_i32 dim 1 : vector<4x384xf32>, i32 -> vector<4x384xf32>
    %c4 = arith.constant 4 : index
    %c0_12 = arith.constant 0 : index
    %8 = vector.load %arg7[%c4, %c0_12] : memref<36x384xf32, #tpu.memory_space<vmem>>, vector<4x384xf32>
    tpu.vector_store %arg7[%c4, %c0_12], %7 {strides = array<i32>} : memref<36x384xf32, #tpu.memory_space<vmem>>, vector<4x384xf32>,
    %c382_i32 = arith.constant 382 : i32
    %9 = tpu.dynamic_rotate %5 by %c382_i32 dim 1 : vector<4x384xf32>, i32 -> vector<4x384xf32>
    %c8 = arith.constant 8 : index
    %c0_13 = arith.constant 0 : index
    %10 = vector.load %arg7[%c8, %c0_13] : memref<36x384xf32, #tpu.memory_space<vmem>>, vector<4x384xf32>
    tpu.vector_store %arg7[%c8, %c0_13], %9 {strides = array<i32>} : memref<36x384xf32, #tpu.memory_space<vmem>>, vector<4x384xf32>,
    %c366_i32 = arith.constant 366 : i32
    %11 = tpu.dynamic_rotate %5 by %c366_i32 dim 1 : vector<4x384xf32>, i32 -> vector<4x384xf32>
    %c12 = arith.constant 12 : index
    %c0_14 = arith.constant 0 : index
    %12 = vector.load %arg7[%c12, %c0_14] : memref<36x384xf32, #tpu.memory_space<vmem>>, vector<4x384xf32>
    tpu.vector_store %arg7[%c12, %c0_14], %11 {strides = array<i32>} : memref<36x384xf32, #tpu.memory_space<vmem>>, vector<4x384xf32>,
    %c365_i32 = arith.constant 365 : i32
    %13 = tpu.dynamic_rotate %5 by %c365_i32 dim 1 : vector<4x384xf32>, i32 -> vector<4x384xf32>
    %c16 = arith.constant 16 : index
    %c0_15 = arith.constant 0 : index
    %14 = vector.load %arg7[%c16, %c0_15] : memref<36x384xf32, #tpu.memory_space<vmem>>, vector<4x384xf32>
    tpu.vector_store %arg7[%c16, %c0_15], %13 {strides = array<i32>} : memref<36x384xf32, #tpu.memory_space<vmem>>, vector<4x384xf32>,
    %c364_i32 = arith.constant 364 : i32
    %15 = tpu.dynamic_rotate %5 by %c364_i32 dim 1 : vector<4x384xf32>, i32 -> vector<4x384xf32>
    %c20 = arith.constant 20 : index
    %c0_16 = arith.constant 0 : index
    %16 = vector.load %arg7[%c20, %c0_16] : memref<36x384xf32, #tpu.memory_space<vmem>>, vector<4x384xf32>
    tpu.vector_store %arg7[%c20, %c0_16], %15 {strides = array<i32>} : memref<36x384xf32, #tpu.memory_space<vmem>>, vector<4x384xf32>,
    %c348_i32 = arith.constant 348 : i32
    %17 = tpu.dynamic_rotate %5 by %c348_i32 dim 1 : vector<4x384xf32>, i32 -> vector<4x384xf32>
    %c24 = arith.constant 24 : index
    %c0_17 = arith.constant 0 : index
    %18 = vector.load %arg7[%c24, %c0_17] : memref<36x384xf32, #tpu.memory_space<vmem>>, vector<4x384xf32>
    tpu.vector_store %arg7[%c24, %c0_17], %17 {strides = array<i32>} : memref<36x384xf32, #tpu.memory_space<vmem>>, vector<4x384xf32>,
    %c347_i32 = arith.constant 347 : i32
    %19 = tpu.dynamic_rotate %5 by %c347_i32 dim 1 : vector<4x384xf32>, i32 -> vector<4x384xf32>
    %c28 = arith.constant 28 : index
    %c0_18 = arith.constant 0 : index
    %20 = vector.load %arg7[%c28, %c0_18] : memref<36x384xf32, #tpu.memory_space<vmem>>, vector<4x384xf32>
    tpu.vector_store %arg7[%c28, %c0_18], %19 {strides = array<i32>} : memref<36x384xf32, #tpu.memory_space<vmem>>, vector<4x384xf32>,
    %c346_i32 = arith.constant 346 : i32
    %21 = tpu.dynamic_rotate %5 by %c346_i32 dim 1 : vector<4x384xf32>, i32 -> vector<4x384xf32>
    %c32 = arith.constant 32 : index
    %c0_19 = arith.constant 0 : index
    %22 = vector.load %arg7[%c32, %c0_19] : memref<36x384xf32, #tpu.memory_space<vmem>>, vector<4x384xf32>
    tpu.vector_store %arg7[%c32, %c0_19], %21 {strides = array<i32>} : memref<36x384xf32, #tpu.memory_space<vmem>>, vector<4x384xf32>,
    %c0_20 = arith.constant 0 : index
    %c0_21 = arith.constant 0 : index
    %23 = vector.load %arg7[%c0_20, %c0_21] : memref<36x384xf32, #tpu.memory_space<vmem>>, vector<36x384xf32>
    %cst = arith.constant dense<0.000000e+00> : vector<16x384xf32>
    %24 = tpu.matmul %0, %23, %cst {dimension_numbers = #tpu.dot_dimension_numbers<[1], [0], [0], [1], [0, 0, 1, 1], [], []>} : vector<16x36xf32>, vector<36x384xf32>, vector<16x384xf32> -> vector<16x384xf32>
    %25 = vector.broadcast %1 : vector<16x1xf32> to vector<16x384xf32>
    %26 = arith.addf %24, %25 : vector<16x384xf32>
    %27 = vector.extract_strided_slice %26 {offsets = [0, 0], sizes = [8, 384], strides = [1, 1]} : vector<16x384xf32> to vector<8x384xf32>
    %28 = vector.extract_strided_slice %26 {offsets = [8, 0], sizes = [8, 384], strides = [1, 1]} : vector<16x384xf32> to vector<8x384xf32>
    %cst_22 = arith.constant 0.000000e+00 : f32
    %29 = vector.broadcast %cst_22 : f32 to vector<8x384xf32>
    %30 = arith.cmpf ogt, %27, %29 : vector<8x384xf32>
    %cst_23 = arith.constant 0.000000e+00 : f32
    %31 = vector.broadcast %cst_23 : f32 to vector<8x384xf32>
    %32 = arith.minimumf %27, %31 : vector<8x384xf32>
    %33 = math.exp %32 : vector<8x384xf32>
    %cst_24 = arith.constant 1.000000e+00 : f32
    %34 = vector.broadcast %cst_24 : f32 to vector<8x384xf32>
    %35 = arith.subf %33, %34 : vector<8x384xf32>
    %36 = arith.select %30, %27, %35 : vector<8x384xi1>, vector<8x384xf32>
    %cst_25 = arith.constant 0.000000e+00 : f32
    %37 = vector.broadcast %cst_25 : f32 to vector<8x384xf32>
    %38 = arith.subf %37, %28 : vector<8x384xf32>
    %39 = math.exp %38 : vector<8x384xf32>
    %cst_26 = arith.constant 1.000000e+00 : f32
    %40 = vector.broadcast %cst_26 : f32 to vector<8x384xf32>
    %41 = arith.addf %40, %39 : vector<8x384xf32>
    %42 = tpu.reciprocal %41 : vector<8x384xf32> -> vector<8x384xf32>
    %43 = arith.mulf %36, %42 : vector<8x384xf32>
    %44 = vector.broadcast %2 : vector<8x1xf32> to vector<8x384xf32>
    %45 = arith.mulf %43, %44 : vector<8x384xf32>
    %46 = vector.broadcast %3 : vector<8x1xf32> to vector<8x384xf32>
    %47 = arith.addf %45, %46 : vector<8x384xf32>
    %c0_27 = arith.constant 0 : index
    %c0_28 = arith.constant 0 : index
    %48 = vector.load %arg8[%c0_27, %c0_28] : memref<8x384xf32, #tpu.memory_space<vmem>>, vector<8x384xf32>
    tpu.vector_store %arg8[%c0_27, %c0_28], %47 {strides = array<i32>} : memref<8x384xf32, #tpu.memory_space<vmem>>, vector<8x384xf32>,
    %c0_29 = arith.constant 0 : index
    %c0_30 = arith.constant 0 : index
    %49 = vector.load %arg8[%c0_29, %c0_30] : memref<8x384xf32, #tpu.memory_space<vmem>>, vector<8x16xf32>
    %c0_31 = arith.constant 0 : index
    %c0_32 = arith.constant 0 : index
    %c0_33 = arith.constant 0 : index
    %50 = vector.load %arg6[%c0_31, %c0_32, %c0_33] : memref<1x8x256xf32, #tpu.memory_space<vmem>>, vector<1x8x16xf32>
    %51 = vector.shape_cast %50 : vector<1x8x16xf32> to vector<8x16xf32>
    %52 = vector.shape_cast %49 : vector<8x16xf32> to vector<1x8x16xf32>
    tpu.vector_store %arg6[%c0_31, %c0_32, %c0_33], %52 {strides = array<i32>} : memref<1x8x256xf32, #tpu.memory_space<vmem>>, vector<1x8x16xf32>,
    %c0_34 = arith.constant 0 : index
    %c18 = arith.constant 18 : index
    %53 = vector.load %arg8[%c0_34, %c18] : memref<8x384xf32, #tpu.memory_space<vmem>>, vector<8x16xf32>
    %c0_35 = arith.constant 0 : index
    %c0_36 = arith.constant 0 : index
    %c16_37 = arith.constant 16 : index
    %54 = vector.load %arg6[%c0_35, %c0_36, %c16_37] : memref<1x8x256xf32, #tpu.memory_space<vmem>>, vector<1x8x16xf32>
    %55 = vector.shape_cast %54 : vector<1x8x16xf32> to vector<8x16xf32>
    %56 = vector.shape_cast %53 : vector<8x16xf32> to vector<1x8x16xf32>
    tpu.vector_store %arg6[%c0_35, %c0_36, %c16_37], %56 {strides = array<i32>} : memref<1x8x256xf32, #tpu.memory_space<vmem>>, vector<1x8x16xf32>,
    %c0_38 = arith.constant 0 : index
    %c36 = arith.constant 36 : index
    %57 = vector.load %arg8[%c0_38, %c36] : memref<8x384xf32, #tpu.memory_space<vmem>>, vector<8x16xf32>
    %c0_39 = arith.constant 0 : index
    %c0_40 = arith.constant 0 : index
    %c32_41 = arith.constant 32 : index
    %58 = vector.load %arg6[%c0_39, %c0_40, %c32_41] : memref<1x8x256xf32, #tpu.memory_space<vmem>>, vector<1x8x16xf32>
    %59 = vector.shape_cast %58 : vector<1x8x16xf32> to vector<8x16xf32>
    %60 = vector.shape_cast %57 : vector<8x16xf32> to vector<1x8x16xf32>
    tpu.vector_store %arg6[%c0_39, %c0_40, %c32_41], %60 {strides = array<i32>} : memref<1x8x256xf32, #tpu.memory_space<vmem>>, vector<1x8x16xf32>,
    %c0_42 = arith.constant 0 : index
    %c54 = arith.constant 54 : index
    %61 = vector.load %arg8[%c0_42, %c54] : memref<8x384xf32, #tpu.memory_space<vmem>>, vector<8x16xf32>
    %c0_43 = arith.constant 0 : index
    %c0_44 = arith.constant 0 : index
    %c48 = arith.constant 48 : index
    %62 = vector.load %arg6[%c0_43, %c0_44, %c48] : memref<1x8x256xf32, #tpu.memory_space<vmem>>, vector<1x8x16xf32>
    %63 = vector.shape_cast %62 : vector<1x8x16xf32> to vector<8x16xf32>
    %64 = vector.shape_cast %61 : vector<8x16xf32> to vector<1x8x16xf32>
    tpu.vector_store %arg6[%c0_43, %c0_44, %c48], %64 {strides = array<i32>} : memref<1x8x256xf32, #tpu.memory_space<vmem>>, vector<1x8x16xf32>,
    %c0_45 = arith.constant 0 : index
    %c72 = arith.constant 72 : index
    %65 = vector.load %arg8[%c0_45, %c72] : memref<8x384xf32, #tpu.memory_space<vmem>>, vector<8x16xf32>
    %c0_46 = arith.constant 0 : index
    %c0_47 = arith.constant 0 : index
    %c64 = arith.constant 64 : index
    %66 = vector.load %arg6[%c0_46, %c0_47, %c64] : memref<1x8x256xf32, #tpu.memory_space<vmem>>, vector<1x8x16xf32>
    %67 = vector.shape_cast %66 : vector<1x8x16xf32> to vector<8x16xf32>
    %68 = vector.shape_cast %65 : vector<8x16xf32> to vector<1x8x16xf32>
    tpu.vector_store %arg6[%c0_46, %c0_47, %c64], %68 {strides = array<i32>} : memref<1x8x256xf32, #tpu.memory_space<vmem>>, vector<1x8x16xf32>,
    %c0_48 = arith.constant 0 : index
    %c90 = arith.constant 90 : index
    %69 = vector.load %arg8[%c0_48, %c90] : memref<8x384xf32, #tpu.memory_space<vmem>>, vector<8x16xf32>
    %c0_49 = arith.constant 0 : index
    %c0_50 = arith.constant 0 : index
    %c80 = arith.constant 80 : index
    %70 = vector.load %arg6[%c0_49, %c0_50, %c80] : memref<1x8x256xf32, #tpu.memory_space<vmem>>, vector<1x8x16xf32>
    %71 = vector.shape_cast %70 : vector<1x8x16xf32> to vector<8x16xf32>
    %72 = vector.shape_cast %69 : vector<8x16xf32> to vector<1x8x16xf32>
    tpu.vector_store %arg6[%c0_49, %c0_50, %c80], %72 {strides = array<i32>} : memref<1x8x256xf32, #tpu.memory_space<vmem>>, vector<1x8x16xf32>,
    %c0_51 = arith.constant 0 : index
    %c108 = arith.constant 108 : index
    %73 = vector.load %arg8[%c0_51, %c108] : memref<8x384xf32, #tpu.memory_space<vmem>>, vector<8x16xf32>
    %c0_52 = arith.constant 0 : index
    %c0_53 = arith.constant 0 : index
    %c96 = arith.constant 96 : index
    %74 = vector.load %arg6[%c0_52, %c0_53, %c96] : memref<1x8x256xf32, #tpu.memory_space<vmem>>, vector<1x8x16xf32>
    %75 = vector.shape_cast %74 : vector<1x8x16xf32> to vector<8x16xf32>
    %76 = vector.shape_cast %73 : vector<8x16xf32> to vector<1x8x16xf32>
    tpu.vector_store %arg6[%c0_52, %c0_53, %c96], %76 {strides = array<i32>} : memref<1x8x256xf32, #tpu.memory_space<vmem>>, vector<1x8x16xf32>,
    %c0_54 = arith.constant 0 : index
    %c126 = arith.constant 126 : index
    %77 = vector.load %arg8[%c0_54, %c126] : memref<8x384xf32, #tpu.memory_space<vmem>>, vector<8x16xf32>
    %c0_55 = arith.constant 0 : index
    %c0_56 = arith.constant 0 : index
    %c112 = arith.constant 112 : index
    %78 = vector.load %arg6[%c0_55, %c0_56, %c112] : memref<1x8x256xf32, #tpu.memory_space<vmem>>, vector<1x8x16xf32>
    %79 = vector.shape_cast %78 : vector<1x8x16xf32> to vector<8x16xf32>
    %80 = vector.shape_cast %77 : vector<8x16xf32> to vector<1x8x16xf32>
    tpu.vector_store %arg6[%c0_55, %c0_56, %c112], %80 {strides = array<i32>} : memref<1x8x256xf32, #tpu.memory_space<vmem>>, vector<1x8x16xf32>,
    %c0_57 = arith.constant 0 : index
    %c144 = arith.constant 144 : index
    %81 = vector.load %arg8[%c0_57, %c144] : memref<8x384xf32, #tpu.memory_space<vmem>>, vector<8x16xf32>
    %c0_58 = arith.constant 0 : index
    %c0_59 = arith.constant 0 : index
    %c128 = arith.constant 128 : index
    %82 = vector.load %arg6[%c0_58, %c0_59, %c128] : memref<1x8x256xf32, #tpu.memory_space<vmem>>, vector<1x8x16xf32>
    %83 = vector.shape_cast %82 : vector<1x8x16xf32> to vector<8x16xf32>
    %84 = vector.shape_cast %81 : vector<8x16xf32> to vector<1x8x16xf32>
    tpu.vector_store %arg6[%c0_58, %c0_59, %c128], %84 {strides = array<i32>} : memref<1x8x256xf32, #tpu.memory_space<vmem>>, vector<1x8x16xf32>,
    %c0_60 = arith.constant 0 : index
    %c162 = arith.constant 162 : index
    %85 = vector.load %arg8[%c0_60, %c162] : memref<8x384xf32, #tpu.memory_space<vmem>>, vector<8x16xf32>
    %c0_61 = arith.constant 0 : index
    %c0_62 = arith.constant 0 : index
    %c144_63 = arith.constant 144 : index
    %86 = vector.load %arg6[%c0_61, %c0_62, %c144_63] : memref<1x8x256xf32, #tpu.memory_space<vmem>>, vector<1x8x16xf32>
    %87 = vector.shape_cast %86 : vector<1x8x16xf32> to vector<8x16xf32>
    %88 = vector.shape_cast %85 : vector<8x16xf32> to vector<1x8x16xf32>
    tpu.vector_store %arg6[%c0_61, %c0_62, %c144_63], %88 {strides = array<i32>} : memref<1x8x256xf32, #tpu.memory_space<vmem>>, vector<1x8x16xf32>,
    %c0_64 = arith.constant 0 : index
    %c180 = arith.constant 180 : index
    %89 = vector.load %arg8[%c0_64, %c180] : memref<8x384xf32, #tpu.memory_space<vmem>>, vector<8x16xf32>
    %c0_65 = arith.constant 0 : index
    %c0_66 = arith.constant 0 : index
    %c160 = arith.constant 160 : index
    %90 = vector.load %arg6[%c0_65, %c0_66, %c160] : memref<1x8x256xf32, #tpu.memory_space<vmem>>, vector<1x8x16xf32>
    %91 = vector.shape_cast %90 : vector<1x8x16xf32> to vector<8x16xf32>
    %92 = vector.shape_cast %89 : vector<8x16xf32> to vector<1x8x16xf32>
    tpu.vector_store %arg6[%c0_65, %c0_66, %c160], %92 {strides = array<i32>} : memref<1x8x256xf32, #tpu.memory_space<vmem>>, vector<1x8x16xf32>,
    %c0_67 = arith.constant 0 : index
    %c198 = arith.constant 198 : index
    %93 = vector.load %arg8[%c0_67, %c198] : memref<8x384xf32, #tpu.memory_space<vmem>>, vector<8x16xf32>
    %c0_68 = arith.constant 0 : index
    %c0_69 = arith.constant 0 : index
    %c176 = arith.constant 176 : index
    %94 = vector.load %arg6[%c0_68, %c0_69, %c176] : memref<1x8x256xf32, #tpu.memory_space<vmem>>, vector<1x8x16xf32>
    %95 = vector.shape_cast %94 : vector<1x8x16xf32> to vector<8x16xf32>
    %96 = vector.shape_cast %93 : vector<8x16xf32> to vector<1x8x16xf32>
    tpu.vector_store %arg6[%c0_68, %c0_69, %c176], %96 {strides = array<i32>} : memref<1x8x256xf32, #tpu.memory_space<vmem>>, vector<1x8x16xf32>,
    %c0_70 = arith.constant 0 : index
    %c216 = arith.constant 216 : index
    %97 = vector.load %arg8[%c0_70, %c216] : memref<8x384xf32, #tpu.memory_space<vmem>>, vector<8x16xf32>
    %c0_71 = arith.constant 0 : index
    %c0_72 = arith.constant 0 : index
    %c192 = arith.constant 192 : index
    %98 = vector.load %arg6[%c0_71, %c0_72, %c192] : memref<1x8x256xf32, #tpu.memory_space<vmem>>, vector<1x8x16xf32>
    %99 = vector.shape_cast %98 : vector<1x8x16xf32> to vector<8x16xf32>
    %100 = vector.shape_cast %97 : vector<8x16xf32> to vector<1x8x16xf32>
    tpu.vector_store %arg6[%c0_71, %c0_72, %c192], %100 {strides = array<i32>} : memref<1x8x256xf32, #tpu.memory_space<vmem>>, vector<1x8x16xf32>,
    %c0_73 = arith.constant 0 : index
    %c234 = arith.constant 234 : index
    %101 = vector.load %arg8[%c0_73, %c234] : memref<8x384xf32, #tpu.memory_space<vmem>>, vector<8x16xf32>
    %c0_74 = arith.constant 0 : index
    %c0_75 = arith.constant 0 : index
    %c208 = arith.constant 208 : index
    %102 = vector.load %arg6[%c0_74, %c0_75, %c208] : memref<1x8x256xf32, #tpu.memory_space<vmem>>, vector<1x8x16xf32>
    %103 = vector.shape_cast %102 : vector<1x8x16xf32> to vector<8x16xf32>
    %104 = vector.shape_cast %101 : vector<8x16xf32> to vector<1x8x16xf32>
    tpu.vector_store %arg6[%c0_74, %c0_75, %c208], %104 {strides = array<i32>} : memref<1x8x256xf32, #tpu.memory_space<vmem>>, vector<1x8x16xf32>,
    %c0_76 = arith.constant 0 : index
    %c252 = arith.constant 252 : index
    %105 = vector.load %arg8[%c0_76, %c252] : memref<8x384xf32, #tpu.memory_space<vmem>>, vector<8x16xf32>
    %c0_77 = arith.constant 0 : index
    %c0_78 = arith.constant 0 : index
    %c224 = arith.constant 224 : index
    %106 = vector.load %arg6[%c0_77, %c0_78, %c224] : memref<1x8x256xf32, #tpu.memory_space<vmem>>, vector<1x8x16xf32>
    %107 = vector.shape_cast %106 : vector<1x8x16xf32> to vector<8x16xf32>
    %108 = vector.shape_cast %105 : vector<8x16xf32> to vector<1x8x16xf32>
    tpu.vector_store %arg6[%c0_77, %c0_78, %c224], %108 {strides = array<i32>} : memref<1x8x256xf32, #tpu.memory_space<vmem>>, vector<1x8x16xf32>,
    %c0_79 = arith.constant 0 : index
    %c270 = arith.constant 270 : index
    %109 = vector.load %arg8[%c0_79, %c270] : memref<8x384xf32, #tpu.memory_space<vmem>>, vector<8x16xf32>
    %c0_80 = arith.constant 0 : index
    %c0_81 = arith.constant 0 : index
    %c240 = arith.constant 240 : index
    %110 = vector.load %arg6[%c0_80, %c0_81, %c240] : memref<1x8x256xf32, #tpu.memory_space<vmem>>, vector<1x8x16xf32>
    %111 = vector.shape_cast %110 : vector<1x8x16xf32> to vector<8x16xf32>
    %112 = vector.shape_cast %109 : vector<8x16xf32> to vector<1x8x16xf32>
    tpu.vector_store %arg6[%c0_80, %c0_81, %c240], %112 {strides = array<i32>} : memref<1x8x256xf32, #tpu.memory_space<vmem>>, vector<1x8x16xf32>,
    return
  }
  func.func @transform_0(%arg0: i32) -> (i32, i32, i32) {
    %c0_i32 = arith.constant 0 : i32
    %c0_i32_0 = arith.constant 0 : i32
    %c0_i32_1 = arith.constant 0 : i32
    return %arg0, %c0_i32, %c0_i32_0 : i32, i32, i32
  }
  func.func @transform_1(%arg0: i32) -> (i32, i32) {
    %c0_i32 = arith.constant 0 : i32
    %c0_i32_0 = arith.constant 0 : i32
    %c0_i32_1 = arith.constant 0 : i32
    return %c0_i32, %c0_i32_0 : i32, i32
  }
  func.func @transform_2(%arg0: i32) -> (i32, i32) {
    %c0_i32 = arith.constant 0 : i32
    %c0_i32_0 = arith.constant 0 : i32
    %c0_i32_1 = arith.constant 0 : i32
    return %c0_i32, %c0_i32_0 : i32, i32
  }
  func.func @transform_3(%arg0: i32) -> (i32, i32) {
    %c0_i32 = arith.constant 0 : i32
    %c0_i32_0 = arith.constant 0 : i32
    %c0_i32_1 = arith.constant 0 : i32
    return %c0_i32, %c0_i32_0 : i32, i32
  }
  func.func @transform_4(%arg0: i32) -> (i32, i32) {
    %c0_i32 = arith.constant 0 : i32
    %c0_i32_0 = arith.constant 0 : i32
    %c0_i32_1 = arith.constant 0 : i32
    return %c0_i32, %c0_i32_0 : i32, i32
  }
  func.func @transform_5(%arg0: i32) -> (i32, i32, i32) {
    %c0_i32 = arith.constant 0 : i32
    %c0_i32_0 = arith.constant 0 : i32
    %c0_i32_1 = arith.constant 0 : i32
    return %arg0, %c0_i32, %c0_i32_0 : i32, i32, i32
  }
}

</mosaic_0001>

<llo_original>
// kernel: gated_block_pw.3
$region0: #{gated_block_pw.3}
  #allocation0 [shape = 'u32[]', space=smem, size = 0x4, offset = 0x4, fixed_abs, tag = 'smem constant byte address 0x4 - core index']
  #allocation1 [shape = 'u32[144,128]{1,0:T(1,128)}', space=vmem, size = 0x12000, scoped, tag = 'internal scratch']
  #allocation2 [shape = 'f32[36,384]{1,0:T(8,128)}', space=vmem, size = 0xf000, scoped, tag = 'scratch operand']
  #allocation3 [shape = 'f32[8,384]{1,0:T(8,128)}', space=vmem, size = 0x3000, scoped, tag = 'scratch operand']
  %s0 = inlined_call_operand.vmem [shape: f32[2,4,384], index: 0, kind: input, shape index: {}]
  %s1 = inlined_call_operand.vmem [shape: f32[16,36], index: 1, kind: input, shape index: {}]
  %s2 = inlined_call_operand.vmem [shape: f32[16,1], index: 2, kind: input, shape index: {}]
  %s3 = inlined_call_operand.vmem [shape: f32[8,1], index: 3, kind: input, shape index: {}]
  %s4 = inlined_call_operand.vmem [shape: f32[8,1], index: 4, kind: input, shape index: {}]
  %s5 = inlined_call_operand.vmem [shape: f32[2,8,256], index: 5, kind: output, shape index: {}]
  %s6 = sld [smem:[#allocation0]]
  $region53: #{gated_block_pw.3} parent=0
    _
  %s8 = ssub.s32 1, %s6
  %s9 = scalar_select 0, %s8, %s6
  loop: start=0, step=1, limit=4
  $region2: #{gated_block_pw.3} parent=0 // loop_pre_header
    _
  $region3: #{gated_block_pw.3} parent=0 // loop_header
    %s11 = sphi 0, %s15
    %p12 = scmp.ge.s32.totalorder %s11, 4
    %s21 = sphi 0, %s23
    %s24 = sphi 0, %s21
    %s25 = sphi 0, %s24
    %s41 = sphi 0, %s25
    %s45 = sphi 0, %s45
    %s47 = sphi 0, %s45
    %s48 = sphi 0, %s47
    %s62 = sphi 0, %s48
    %s66 = sphi 0, %s66
    %s68 = sphi 0, %s66
    %s69 = sphi 0, %s68
    %s83 = sphi 0, %s69
    %s87 = sphi 0, %s87
    %s89 = sphi 0, %s87
    %s90 = sphi 0, %s89
    %s104 = sphi 0, %s90
    %s108 = sphi 0, %s108
    %s110 = sphi 0, %s108
    %s111 = sphi 0, %s110
    %s125 = sphi 0, %s111
    %s131 = sphi 0, %s133
    %s134 = sphi 0, %s131
    %s135 = sphi 0, %s134
    %s151 = sphi 0, %s135
  $region4: #{gated_block_pw.3} parent=0 // loop_header_branch
    %14 = sbr.rel (%p12) target = $region8
  $region5: #{gated_block_pw.3} parent=0 // loop_body
    %s16 = ssub.s32 %s11, 1
    %s17 = ssub.s32 %s11, 2
    %s18 = sadd.s32 %s11, 1
    %s19 = ssub.s32 %s11, %s18
    %p20 = scmp.eq.s32.totalorder %s19, 0
    %s22 = sadd.s32 %s21, 1
    %s23 = scalar_select %p20, %s21, %s22
    %p26 = pneg %p20
    %p27 = scmp.eq.s32.totalorder %s11, 1
    %p28 = por %p26, %p27
    %p29 = scmp.ne.s32.totalorder %s21, %s24
    %p30 = scmp.eq.s32.totalorder %s11, 0
    %p31 = por %p29, %p30
    %p32 = scmp.ne.s32.totalorder %s21, %s24
    %p33 = scmp.eq.s32.totalorder %s16, 1
    %p34 = por %p32, %p33
    %p35 = scmp.ne.s32.totalorder %s24, %s25
    %p36 = scmp.eq.s32.totalorder %s16, 0
    %p37 = por %p35, %p36
    %p38 = scmp.ne.s32.totalorder %s24, %s25
    %p39 = scmp.eq.s32.totalorder %s17, 1
    %p40 = por %p38, %p39
    %p42 = scmp.ne.s32.totalorder %s25, %s41
    %p43 = scmp.eq.s32.totalorder %s17, 0
    %p44 = por %p42, %p43
    %s46 = sadd.s32 %s45, 1
    %p49 = scmp.eq.s32.totalorder %s11, 1
    %p50 = scmp.ne.s32.totalorder %s45, %s47
    %p51 = scmp.eq.s32.totalorder %s11, 0
    %p52 = por %p50, %p51
    %p53 = scmp.ne.s32.totalorder %s45, %s47
    %p54 = scmp.eq.s32.totalorder %s16, 1
    %p55 = por %p53, %p54
    %p56 = scmp.ne.s32.totalorder %s47, %s48
    %p57 = scmp.eq.s32.totalorder %s16, 0
    %p58 = por %p56, %p57
    %p59 = scmp.ne.s32.totalorder %s47, %s48
    %p60 = scmp.eq.s32.totalorder %s17, 1
    %p61 = por %p59, %p60
    %p63 = scmp.ne.s32.totalorder %s48, %s62
    %p64 = scmp.eq.s32.totalorder %s17, 0
    %p65 = por %p63, %p64
    %s67 = sadd.s32 %s66, 1
    %p70 = scmp.eq.s32.totalorder %s11, 1
    %p71 = scmp.ne.s32.totalorder %s66, %s68
    %p72 = scmp.eq.s32.totalorder %s11, 0
    %p73 = por %p71, %p72
    %p74 = scmp.ne.s32.totalorder %s66, %s68
    %p75 = scmp.eq.s32.totalorder %s16, 1
    %p76 = por %p74, %p75
    %p77 = scmp.ne.s32.totalorder %s68, %s69
    %p78 = scmp.eq.s32.totalorder %s16, 0
    %p79 = por %p77, %p78
    %p80 = scmp.ne.s32.totalorder %s68, %s69
    %p81 = scmp.eq.s32.totalorder %s17, 1
    %p82 = por %p80, %p81
    %p84 = scmp.ne.s32.totalorder %s69, %s83
    %p85 = scmp.eq.s32.totalorder %s17, 0
    %p86 = por %p84, %p85
    %s88 = sadd.s32 %s87, 1
    %p91 = scmp.eq.s32.totalorder %s11, 1
    %p92 = scmp.ne.s32.totalorder %s87, %s89
    %p93 = scmp.eq.s32.totalorder %s11, 0
    %p94 = por %p92, %p93
    %p95 = scmp.ne.s32.totalorder %s87, %s89
    %p96 = scmp.eq.s32.totalorder %s16, 1
    %p97 = por %p95, %p96
    %p98 = scmp.ne.s32.totalorder %s89, %s90
    %p99 = scmp.eq.s32.totalorder %s16, 0
    %p100 = por %p98, %p99
    %p101 = scmp.ne.s32.totalorder %s89, %s90
    %p102 = scmp.eq.s32.totalorder %s17, 1
    %p103 = por %p101, %p102
    %p105 = scmp.ne.s32.totalorder %s90, %s104
    %p106 = scmp.eq.s32.totalorder %s17, 0
    %p107 = por %p105, %p106
    %s109 = sadd.s32 %s108, 1
    %p112 = scmp.eq.s32.totalorder %s11, 1
    %p113 = scmp.ne.s32.totalorder %s108, %s110
    %p114 = scmp.eq.s32.totalorder %s11, 0
    %p115 = por %p113, %p114
    %p116 = scmp.ne.s32.totalorder %s108, %s110
    %p117 = scmp.eq.s32.totalorder %s16, 1
    %p118 = por %p116, %p117
    %p119 = scmp.ne.s32.totalorder %s110, %s111
    %p120 = scmp.eq.s32.totalorder %s16, 0
    %p121 = por %p119, %p120
    %p122 = scmp.ne.s32.totalorder %s110, %s111
    %p123 = scmp.eq.s32.totalorder %s17, 1
    %p124 = por %p122, %p123
    %p126 = scmp.ne.s32.totalorder %s111, %s125
    %p127 = scmp.eq.s32.totalorder %s17, 0
    %p128 = por %p126, %p127
    %s129 = ssub.s32 %s11, %s18
    %p130 = scmp.eq.s32.totalorder %s129, 0
    %s132 = sadd.s32 %s131, 1
    %s133 = scalar_select %p130, %s131, %s132
    %p136 = pneg %p130
    %p137 = scmp.eq.s32.totalorder %s11, 1
    %p138 = por %p136, %p137
    %p139 = scmp.ne.s32.totalorder %s131, %s134
    %p140 = scmp.eq.s32.totalorder %s11, 0
    %p141 = por %p139, %p140
    %p142 = scmp.ne.s32.totalorder %s131, %s134
    %p143 = scmp.eq.s32.totalorder %s16, 1
    %p144 = por %p142, %p143
    %p145 = scmp.ne.s32.totalorder %s134, %s135
    %p146 = scmp.eq.s32.totalorder %s16, 0
    %p147 = por %p145, %p146
    %p148 = scmp.ne.s32.totalorder %s134, %s135
    %p149 = scmp.eq.s32.totalorder %s17, 1
    %p150 = por %p148, %p149
    %p152 = scmp.ne.s32.totalorder %s135, %s151
    %p153 = scmp.eq.s32.totalorder %s17, 0
    %p154 = por %p152, %p153
    %p155 = scmp.le.s32.totalorder 1, %s11
    %p156 = scmp.lt.s32.totalorder %s11, 3
    %p157 = pnand %p155, %p156
    %p158 = pneg %p157
    // Predicated region
    $region9: #{gated_block_pw.3} parent=5 // pred_check
      _
    $region10: #{gated_block_pw.3} parent=5 // pred_check_branch
      %160 = sbr.rel (%p157) target = $region12
    $region11: #{gated_block_pw.3} parent=5 // pred_region
      %s161 = ssub.s32 %s11, 1
      // Predicated region
      $region13: #{gated_block_pw.3} parent=11 // pred_check
        %p162 = pneg %p58
      $region14: #{gated_block_pw.3} parent=11 // pred_check_branch
        %164 = sbr.rel (%p162) target = $region16
      $region15: #{gated_block_pw.3} parent=11 // pred_region
        _
      $region16: #{gated_block_pw.3} parent=11 // pred_fallthru
        _
      // Predicated region
      $region17: #{gated_block_pw.3} parent=11 // pred_check
        %p165 = pneg %p79
      $region18: #{gated_block_pw.3} parent=11 // pred_check_branch
        %167 = sbr.rel (%p165) target = $region20
      $region19: #{gated_block_pw.3} parent=11 // pred_region
        _
      $region20: #{gated_block_pw.3} parent=11 // pred_fallthru
        _
      // Predicated region
      $region21: #{gated_block_pw.3} parent=11 // pred_check
        %p168 = pneg %p100
      $region22: #{gated_block_pw.3} parent=11 // pred_check_branch
        %170 = sbr.rel (%p168) target = $region24
      $region23: #{gated_block_pw.3} parent=11 // pred_region
        _
      $region24: #{gated_block_pw.3} parent=11 // pred_fallthru
        _
      // Predicated region
      $region25: #{gated_block_pw.3} parent=11 // pred_check
        %p171 = pneg %p121
      $region26: #{gated_block_pw.3} parent=11 // pred_check_branch
        %173 = sbr.rel (%p171) target = $region28
      $region27: #{gated_block_pw.3} parent=11 // pred_region
        _
      $region28: #{gated_block_pw.3} parent=11 // pred_fallthru
        _
    $region12: #{gated_block_pw.3} parent=5 // pred_fallthru
      _
    %p174 = scmp.lt.s32.totalorder %s11, 2
    // Predicated region
    $region29: #{gated_block_pw.3} parent=5 // pred_check
      %p175 = pneg %p174
    $region30: #{gated_block_pw.3} parent=5 // pred_check_branch
      %177 = sbr.rel (%p175) target = $region32
    $region31: #{gated_block_pw.3} parent=5 // pred_region
      // Predicated region
      $region33: #{gated_block_pw.3} parent=31 // pred_check
        %p178 = pneg %p31
      $region34: #{gated_block_pw.3} parent=31 // pred_check_branch
        %180 = sbr.rel (%p178) target = $region36
      $region35: #{gated_block_pw.3} parent=31 // pred_region
        %p181 = scmp.lt.s32.totalorder %s11, 1
        %s182 = scalar_select %p181, %s11, 1
        %s183 = smul.addr %s182, 3
        %s184 = smul.addr %s183, 4
        %s185 = scalar_lea.vmem %s0, %s184
      $region36: #{gated_block_pw.3} parent=31 // pred_fallthru
        _
    $region32: #{gated_block_pw.3} parent=5 // pred_fallthru
      _
    %p186 = scmp.le.s32.totalorder 1, %s11
    %p187 = scmp.lt.s32.totalorder %s11, 3
    %p188 = pnand %p186, %p187
    %p189 = pneg %p188
    // Predicated region
    $region37: #{gated_block_pw.3} parent=5 // pred_check
      _
    $region38: #{gated_block_pw.3} parent=5 // pred_check_branch
      %191 = sbr.rel (%p188) target = $region40
    $region39: #{gated_block_pw.3} parent=5 // pred_region
      %s192 = ssub.s32 %s11, 1
      %p193 = scmp.lt.s32.totalorder %s16, 1
      %s194 = scalar_select %p193, %s16, 1
      %s195 = smul.addr %s194, 3
      %s196 = smul.addr %s195, 4
      %s197 = scalar_lea.vmem %s0, %s196
      %p198 = pneg %p37
      %p199 = pneg %p34
      %p200 = pneg %p58
      %p201 = pneg %p55
      %p202 = pneg %p79
      %p203 = pneg %p76
      %p204 = pneg %p100
      %p205 = pneg %p97
      %p206 = pneg %p121
      %p207 = pneg %p118
      %p208 = pneg %p147
      %p209 = pneg %p144
      %p210 = scmp.lt.s32.totalorder %s16, 1
      %s211 = scalar_select %p210, %s16, 1
      %s212 = smul.addr %s211, 2
      %s213 = smul.addr %s212, 8
      %s214 = scalar_lea.vmem %s5, %s213
      %p215 = scmp.lt.s32.totalorder %s16, 1
      %s216 = scalar_select %p215, %s16, 1
      %s217 = smul.addr %s216, 3
      %s218 = smul.addr %s217, 4
      %s219 = scalar_lea.vmem %s0, %s218
      %p220 = scmp.lt.s32.totalorder %s16, 1
      %s221 = scalar_select %p220, %s16, 1
      %s222 = smul.addr %s221, 2
      %s223 = smul.addr %s222, 8
      %s224 = scalar_lea.vmem %s5, %s223
      %v225 = vld [vmem:[%s1] sm:$0xff]
      %v226 = vld [vmem:[%s1 + $0x8] sm:$0xff]
      %v227 = vld [vmem:[%s2] sm:$0xff]
      %v228 = vld [vmem:[%s2 + $0x8] sm:$0xff]
      %v229 = vld [vmem:[%s3] sm:$0xff]
      %v230 = vld [vmem:[%s4] sm:$0xff]
      %v231 = vld [vmem:[%s219] sm:$0xff]
      %v232 = vld [vmem:[%s219 + $0x8] sm:$0xf]
      %v234 = vcombine.high %v231, %v231
      %236 = vst [vmem:[#allocation2] sm:$0xf] %v231
      %237 = vst [vmem:[#allocation2 + $0x8] sm:$0xf] %v234
      %238 = vst [vmem:[#allocation2 + $0x10] sm:$0xf] %v232
      %239 = vrot.lane.b32.xlu0 %v231, 127
      %v240 = vpop.permute.xlu0 %239
      %241 = vrot.lane.b32.xlu0 %v234, 127
      %v242 = vpop.permute.xlu0 %241
      %243 = vrot.lane.b32.xlu0 %v232, 127
      %v244 = vpop.permute.xlu0 %243
      %v245 = vlaneseq
      %v246 = vand.u32 %v245, 127
      %vm247 = vcmp.lt.s32.totalorder %v246, 127
      %v248 = vsel %vm247, %v242, %v244
      %v249 = vsel %vm247, %v240, %v242
      %v250 = vsel %vm247, %v244, %v240
      %v254 = vrot.slane %v249, 4
      %v255 = vrot.slane %v248, 4
      %v256 = vrot.slane %v250, 4
      %260 = vst [vmem:[#allocation2] sm:$0xf0] %v254
      %261 = vst [vmem:[#allocation2 + $0x8] sm:$0xf0] %v255
      %262 = vst [vmem:[#allocation2 + $0x10] sm:$0xf0] %v256
      %263 = vrot.lane.b32.xlu0 %v231, 126
      %v264 = vpop.permute.xlu0 %263
      %265 = vrot.lane.b32.xlu0 %v234, 126
      %v266 = vpop.permute.xlu0 %265
      %267 = vrot.lane.b32.xlu0 %v232, 126
      %v268 = vpop.permute.xlu0 %267
      %vm269 = vcmp.lt.s32.totalorder %v246, 126
      %v270 = vsel %vm269, %v266, %v268
      %v271 = vsel %vm269, %v264, %v266
      %v272 = vsel %vm269, %v268, %v264
      %273 = vst [vmem:[#allocation2 + $0x18] sm:$0xf] %v271
      %274 = vst [vmem:[#allocation2 + $0x20] sm:$0xf] %v270
      %275 = vst [vmem:[#allocation2 + $0x28] sm:$0xf] %v272
      %276 = vrot.lane.b32.xlu0 %v231, 110
      %v277 = vpop.permute.xlu0 %276
      %278 = vrot.lane.b32.xlu0 %v234, 110
      %v279 = vpop.permute.xlu0 %278
      %280 = vrot.lane.b32.xlu0 %v232, 110
      %v281 = vpop.permute.xlu0 %280
      %vm282 = vcmp.lt.s32.totalorder %v246, 110
      %v283 = vsel %vm282, %v279, %v281
      %v284 = vsel %vm282, %v277, %v279
      %v285 = vsel %vm282, %v281, %v277
      %v289 = vrot.slane %v284, 4
      %v290 = vrot.slane %v283, 4
      %v291 = vrot.slane %v285, 4
      %295 = vst [vmem:[#allocation2 + $0x18] sm:$0xf0] %v289
      %296 = vst [vmem:[#allocation2 + $0x20] sm:$0xf0] %v290
      %297 = vst [vmem:[#allocation2 + $0x28] sm:$0xf0] %v291
      %298 = vrot.lane.b32.xlu0 %v231, 109
      %v299 = vpop.permute.xlu0 %298
      %300 = vrot.lane.b32.xlu0 %v234, 109
      %v301 = vpop.permute.xlu0 %300
      %302 = vrot.lane.b32.xlu0 %v232, 109
      %v303 = vpop.permute.xlu0 %302
      %vm304 = vcmp.lt.s32.totalorder %v246, 109
      %v305 = vsel %vm304, %v301, %v303
      %v306 = vsel %vm304, %v299, %v301
      %v307 = vsel %vm304, %v303, %v299
      %308 = vst [vmem:[#allocation2 + $0x30] sm:$0xf] %v306
      %309 = vst [vmem:[#allocation2 + $0x38] sm:$0xf] %v305
      %310 = vst [vmem:[#allocation2 + $0x40] sm:$0xf] %v307
      %311 = vrot.lane.b32.xlu0 %v231, 108
      %v312 = vpop.permute.xlu0 %311
      %313 = vrot.lane.b32.xlu0 %v234, 108
      %v314 = vpop.permute.xlu0 %313
      %315 = vrot.lane.b32.xlu0 %v232, 108
      %v316 = vpop.permute.xlu0 %315
      %vm317 = vcmp.lt.s32.totalorder %v246, 108
      %v318 = vsel %vm317, %v314, %v316
      %v319 = vsel %vm317, %v312, %v314
      %v320 = vsel %vm317, %v316, %v312
      %v324 = vrot.slane %v319, 4
      %v325 = vrot.slane %v318, 4
      %v326 = vrot.slane %v320, 4
      %330 = vst [vmem:[#allocation2 + $0x30] sm:$0xf0] %v324
      %331 = vst [vmem:[#allocation2 + $0x38] sm:$0xf0] %v325
      %332 = vst [vmem:[#allocation2 + $0x40] sm:$0xf0] %v326
      %333 = vrot.lane.b32.xlu0 %v231, 92
      %v334 = vpop.permute.xlu0 %333
      %335 = vrot.lane.b32.xlu0 %v234, 92
      %v336 = vpop.permute.xlu0 %335
      %337 = vrot.lane.b32.xlu0 %v232, 92
      %v338 = vpop.permute.xlu0 %337
      %vm339 = vcmp.lt.s32.totalorder %v246, 92
      %v340 = vsel %vm339, %v336, %v338
      %v341 = vsel %vm339, %v334, %v336
      %v342 = vsel %vm339, %v338, %v334
      %343 = vst [vmem:[#allocation2 + $0x48] sm:$0xf] %v341
      %344 = vst [vmem:[#allocation2 + $0x50] sm:$0xf] %v340
      %345 = vst [vmem:[#allocation2 + $0x58] sm:$0xf] %v342
      %346 = vrot.lane.b32.xlu0 %v231, 91
      %v347 = vpop.permute.xlu0 %346
      %348 = vrot.lane.b32.xlu0 %v234, 91
      %v349 = vpop.permute.xlu0 %348
      %350 = vrot.lane.b32.xlu0 %v232, 91
      %v351 = vpop.permute.xlu0 %350
      %vm352 = vcmp.lt.s32.totalorder %v246, 91
      %v353 = vsel %vm352, %v349, %v351
      %v354 = vsel %vm352, %v347, %v349
      %v355 = vsel %vm352, %v351, %v347
      %v359 = vrot.slane %v354, 4
      %v360 = vrot.slane %v353, 4
      %v361 = vrot.slane %v355, 4
      %365 = vst [vmem:[#allocation2 + $0x48] sm:$0xf0] %v359
      %366 = vst [vmem:[#allocation2 + $0x50] sm:$0xf0] %v360
      %367 = vst [vmem:[#allocation2 + $0x58] sm:$0xf0] %v361
      %368 = vrot.lane.b32.xlu0 %v231, 90
      %v369 = vpop.permute.xlu0 %368
      %370 = vrot.lane.b32.xlu0 %v234, 90
      %v371 = vpop.permute.xlu0 %370
      %372 = vrot.lane.b32.xlu0 %v232, 90
      %v373 = vpop.permute.xlu0 %372
      %vm374 = vcmp.lt.s32.totalorder %v246, 90
      %v375 = vsel %vm374, %v371, %v373
      %v376 = vsel %vm374, %v369, %v371
      %v377 = vsel %vm374, %v373, %v369
      %378 = vst [vmem:[#allocation2 + $0x60] sm:$0xf] %v376
      %379 = vst [vmem:[#allocation2 + $0x68] sm:$0xf] %v375
      %380 = vst [vmem:[#allocation2 + $0x70] sm:$0xf] %v377
      %v381 = vld [vmem:[#allocation2] sm:$0xff]
      %v382 = vld [vmem:[#allocation2 + $0x8] sm:$0xff]
      %v383 = vld [vmem:[#allocation2 + $0x10] sm:$0xff]
      %v384 = vld [vmem:[#allocation2 + $0x18] sm:$0xff]
      %v385 = vld [vmem:[#allocation2 + $0x20] sm:$0xff]
      %v386 = vld [vmem:[#allocation2 + $0x28] sm:$0xff]
      %v387 = vld [vmem:[#allocation2 + $0x30] sm:$0xff]
      %v388 = vld [vmem:[#allocation2 + $0x38] sm:$0xff]
      %v389 = vld [vmem:[#allocation2 + $0x40] sm:$0xff]
      %v390 = vld [vmem:[#allocation2 + $0x48] sm:$0xff]
      %v391 = vld [vmem:[#allocation2 + $0x50] sm:$0xff]
      %v392 = vld [vmem:[#allocation2 + $0x58] sm:$0xff]
      %v393 = vld [vmem:[#allocation2 + $0x60] sm:$0xf]
      %v394 = vld [vmem:[#allocation2 + $0x68] sm:$0xf]
      %v395 = vld [vmem:[#allocation2 + $0x70] sm:$0xf]
      %397 = vset.pattern.permute.xlu0 0
      %398 = vperm.xlu0 %397, %v227
      %v399 = vpop.permute.xlu0 %398
      %402 = vset.pattern.permute.xlu0 0
      %403 = vperm.xlu0 %402, %v228
      %v404 = vpop.permute.xlu0 %403
      %vm406 = vcmask 293888
      %v408 = vsel %vm406, %v225, 0
      %v411 = vsel %vm406, %v226, 0
      %vm413 = vcmask 1043456
      %v415 = vsel %vm413, %v393, 0
      %v418 = vsel %vm413, %v394, 0
      %v421 = vsel %vm413, %v395, 0
      %423 = vmatprep.subr.mxu0 0.0
      %424 = vmatpush1.msra.mxu0 0.0
      %425 = vmatprep.subr.mxu0 0.0
      %426 = vmatpush1.msra.mxu0 0.0
      %427 = vmatprep.subr.mxu0 0.0
      %428 = vmatpush1.msra.mxu0 0.0
      %429 = vmatprep.subr.mxu0 0.0
      %430 = vmatpush1.msra.mxu0 0.0
      %431 = vmatprep.subr.mxu0 0.0
      %432 = vmatpush1.msra.mxu0 0.0
      %433 = vmatprep.subr.mxu0 0.0
      %434 = vmatpush1.msra.mxu0 0.0
      %435 = vmatprep.subr.mxu0 0.0
      %436 = vmatpush1.msra.mxu0 0.0
      %437 = vmatprep.subr.mxu0 0.0
      %438 = vmatpush1.msra.mxu0 0.0
      %439 = vmatprep.subr.mxu0 0.0
      %440 = vmatpush1.msra.mxu0 0.0
      %441 = vmatprep.subr.mxu0 0.0
      %442 = vmatpush1.msra.mxu0 0.0
      %443 = vmatprep.subr.mxu0 0.0
      %444 = vmatpush1.msra.mxu0 0.0
      %445 = vmatprep.subr.mxu0 %v418
      %446 = vmatpush1.msra.mxu0 %v415
      %447 = vmatprep.subr.mxu0 %v391
      %448 = vmatpush1.msra.mxu0 %v390
      %449 = vmatprep.subr.mxu0 %v388
      %450 = vmatpush1.msra.mxu0 %v387
      %451 = vmatprep.subr.mxu0 %v385
      %452 = vmatpush1.msra.mxu0 %v384
      %453 = vmatprep.subr.mxu0 %v382
      %454 = vmatpush1.msra.mxu0 %v381
      %455 = vmatprep.subr.mxu0 0.0
      %456 = vmatpush2.msra.mxu0 0.0
      %457 = vmatprep.subr.mxu0 0.0
      %458 = vmatpush2.msra.mxu0 0.0
      %459 = vmatprep.subr.mxu0 0.0
      %460 = vmatpush2.msra.mxu0 0.0
      %461 = vmatprep.subr.mxu0 0.0
      %462 = vmatpush2.msra.mxu0 0.0
      %463 = vmatprep.subr.mxu0 0.0
      %464 = vmatpush2.msra.mxu0 0.0
      %465 = vmatprep.subr.mxu0 0.0
      %466 = vmatpush2.msra.mxu0 0.0
      %467 = vmatprep.subr.mxu0 0.0
      %468 = vmatpush2.msra.mxu0 0.0
      %469 = vmatprep.subr.mxu0 0.0
      %470 = vmatpush2.msra.mxu0 0.0
      %471 = vmatprep.subr.mxu0 0.0
      %472 = vmatpush2.msra.mxu0 0.0
      %473 = vmatprep.subr.mxu0 0.0
      %474 = vmatpush2.msra.mxu0 0.0
      %475 = vmatprep.subr.mxu0 0.0
      %476 = vmatpush2.msra.mxu0 0.0
      %477 = vmatprep.subr.mxu0 0.0
      %478 = vmatpush2.msra.mxu0 0.0
      %479 = vmatprep.subr.mxu0 0.0
      %480 = vmatpush2.msra.mxu0 0.0
      %481 = vmatprep.subr.mxu0 0.0
      %482 = vmatpush2.msra.mxu0 0.0
      %483 = vmatprep.subr.mxu0 0.0
      %484 = vmatpush2.msra.mxu0 0.0
      %485 = vmatprep.subr.mxu0 0.0
      %486 = vmatpush2.msra.mxu0 0.0
      %487 = vmatprep.mubr.f32.mxu0 0.0
      %488 = vmatmul.mubr.f32.gmra.mxu0 %v408
      %v489 = vpop.f32.mrf.mxu0
      %v490 = vadd.f32 %v399, %v489
      %v491 = vpop.f32.mrf.mxu0
      %v492 = vadd.f32 %v399, %v491
      %493 = vmatprep.mubr.f32.mxu0 0.0
      %494 = vmatmul.mubr.f32.gmra.mxu0 %v411
      %v495 = vpop.f32.mrf.mxu0
      %v496 = vadd.f32 %v404, %v495
      %v497 = vpop.f32.mrf.mxu0
      %v498 = vadd.f32 %v404, %v497
      %499 = vdwg.mxu0
      %500 = vmatprep.subr.mxu0 0.0
      %501 = vmatpush1.msra.mxu0 0.0
      %502 = vmatprep.subr.mxu0 0.0
      %503 = vmatpush1.msra.mxu0 0.0
      %504 = vmatprep.subr.mxu0 0.0
      %505 = vmatpush1.msra.mxu0 0.0
      %506 = vmatprep.subr.mxu0 0.0
      %507 = vmatpush1.msra.mxu0 0.0
      %508 = vmatprep.subr.mxu0 0.0
      %509 = vmatpush1.msra.mxu0 0.0
      %510 = vmatprep.subr.mxu0 0.0
      %511 = vmatpush1.msra.mxu0 0.0
      %512 = vmatprep.subr.mxu0 0.0
      %513 = vmatpush1.msra.mxu0 0.0
      %514 = vmatprep.subr.mxu0 0.0
      %515 = vmatpush1.msra.mxu0 0.0
      %516 = vmatprep.subr.mxu0 0.0
      %517 = vmatpush1.msra.mxu0 0.0
      %518 = vmatprep.subr.mxu0 0.0
      %519 = vmatpush1.msra.mxu0 0.0
      %520 = vmatprep.subr.mxu0 0.0
      %521 = vmatpush1.msra.mxu0 0.0
      %522 = vmatprep.subr.mxu0 0.0
      %523 = vmatpush1.msra.mxu0 %v421
      %524 = vmatprep.subr.mxu0 0.0
      %525 = vmatpush1.msra.mxu0 %v392
      %526 = vmatprep.subr.mxu0 0.0
      %527 = vmatpush1.msra.mxu0 %v389
      %528 = vmatprep.subr.mxu0 0.0
      %529 = vmatpush1.msra.mxu0 %v386
      %530 = vmatprep.subr.mxu0 0.0
      %531 = vmatpush1.msra.mxu0 %v383
      %532 = vmatprep.subr.mxu0 0.0
      %533 = vmatpush2.msra.mxu0 0.0
      %534 = vmatprep.subr.mxu0 0.0
      %535 = vmatpush2.msra.mxu0 0.0
      %536 = vmatprep.subr.mxu0 0.0
      %537 = vmatpush2.msra.mxu0 0.0
      %538 = vmatprep.subr.mxu0 0.0
      %539 = vmatpush2.msra.mxu0 0.0
      %540 = vmatprep.subr.mxu0 0.0
      %541 = vmatpush2.msra.mxu0 0.0
      %542 = vmatprep.subr.mxu0 0.0
      %543 = vmatpush2.msra.mxu0 0.0
      %544 = vmatprep.subr.mxu0 0.0
      %545 = vmatpush2.msra.mxu0 0.0
      %546 = vmatprep.subr.mxu0 0.0
      %547 = vmatpush2.msra.mxu0 0.0
      %548 = vmatprep.subr.mxu0 0.0
      %549 = vmatpush2.msra.mxu0 0.0
      %550 = vmatprep.subr.mxu0 0.0
      %551 = vmatpush2.msra.mxu0 0.0
      %552 = vmatprep.subr.mxu0 0.0
      %553 = vmatpush2.msra.mxu0 0.0
      %554 = vmatprep.subr.mxu0 0.0
      %555 = vmatpush2.msra.mxu0 0.0
      %556 = vmatprep.subr.mxu0 0.0
      %557 = vmatpush2.msra.mxu0 0.0
      %558 = vmatprep.subr.mxu0 0.0
      %559 = vmatpush2.msra.mxu0 0.0
      %560 = vmatprep.subr.mxu0 0.0
      %561 = vmatpush2.msra.mxu0 0.0
      %562 = vmatprep.subr.mxu0 0.0
      %563 = vmatpush2.msra.mxu0 0.0
      %564 = vmatprep.mubr.f32.mxu0 0.0
      %565 = vmatmul.mubr.f32.gmra.mxu0 %v408
      %v566 = vpop.f32.mrf.mxu0
      %v567 = vadd.f32 %v399, %v566
      %v568 = vpop.f32.mrf.mxu0
      %569 = vmatprep.mubr.f32.mxu0 0.0
      %570 = vmatmul.mubr.f32.gmra.mxu0 %v411
      %v571 = vpop.f32.mrf.mxu0
      %v572 = vadd.f32 %v404, %v571
      %v573 = vpop.f32.mrf.mxu0
      %574 = vdwg.mxu0
      %vm575 = vcmp.gt.f32.partialorder %v490, 0.0
      %vm576 = vcmp.gt.f32.partialorder %v492, 0.0
      %vm577 = vcmp.gt.f32.partialorder %v567, 0.0
      %v578 = vmin.f32 %v490, 0.0
      %v579 = vmin.f32 %v492, 0.0
      %v580 = vmin.f32 %v567, 0.0
      %v581 = vmul.f32 %v578, 1.442695
      %v582 = vpow.pop %v581
      %v583 = vmul.f32 %v579, 1.442695
      %v584 = vpow.pop %v583
      %v585 = vmul.f32 %v580, 1.442695
      %v586 = vpow.pop %v585
      %v587 = vsub.f32 %v582, 1.0
      %v588 = vsub.f32 %v584, 1.0
      %v589 = vsub.f32 %v586, 1.0
      %v590 = vsel %vm575, %v490, %v587
      %v591 = vsel %vm576, %v492, %v588
      %v592 = vsel %vm577, %v567, %v589
      %v593 = vsub.f32 0.0, %v496
      %v594 = vsub.f32 0.0, %v498
      %v595 = vsub.f32 0.0, %v572
      %v596 = vmul.f32 %v593, 1.442695
      %v597 = vpow.pop %v596
      %v598 = vmul.f32 %v594, 1.442695
      %v599 = vpow.pop %v598
      %v600 = vmul.f32 %v595, 1.442695
      %v601 = vpow.pop %v600
      %v602 = vadd.f32 %v597, 1.0
      %v603 = vadd.f32 %v599, 1.0
      %v604 = vadd.f32 %v601, 1.0
      %v605 = vrcp.pop %v602
      %v606 = vrcp.pop %v603
      %v607 = vrcp.pop %v604
      %v608 = vmul.f32 %v590, %v605
      %v609 = vmul.f32 %v591, %v606
      %v610 = vmul.f32 %v592, %v607
      %612 = vset.pattern.permute.xlu0 0
      %613 = vperm.xlu0 %612, %v229
      %v614 = vpop.permute.xlu0 %613
      %v616 = vmul.f32 %v608, %v614
      %v617 = vmul.f32 %v609, %v614
      %v618 = vmul.f32 %v610, %v614
      %620 = vset.pattern.permute.xlu0 0
      %621 = vperm.xlu0 %620, %v230
      %v622 = vpop.permute.xlu0 %621
      %v624 = vadd.f32 %v616, %v622
      %v625 = vadd.f32 %v617, %v622
      %v626 = vadd.f32 %v618, %v622
      %627 = vst [vmem:[#allocation3] sm:$0xff] %v624
      %628 = vst [vmem:[#allocation3 + $0x8] sm:$0xff] %v625
      %629 = vst [vmem:[#allocation3 + $0x10] sm:$0xff] %v626
      %v630 = vld [vmem:[#allocation3] sm:$0xff]
      %vm631 = vcmask 130048
      %632 = vst.msk [vmem:[%s224] sm:$0xff] %vm631, %v630
      %v633 = vld [vmem:[#allocation3] sm:$0xff]
      %635 = vrot.lane.b32.xlu0 %v633, 126
      %v636 = vpop.permute.xlu0 %635
      %vm638 = vcmask 261248
      %639 = vst.msk [vmem:[%s224] sm:$0xff] %vm638, %v636
      %v640 = vld [vmem:[#allocation3] sm:$0xff]
      %642 = vrot.lane.b32.xlu0 %v640, 124
      %v643 = vpop.permute.xlu0 %642
      %vm645 = vcmask 392448
      %646 = vst.msk [vmem:[%s224] sm:$0xff] %vm645, %v643
      %v647 = vld [vmem:[#allocation3] sm:$0xff]
      %649 = vrot.lane.b32.xlu0 %v647, 122
      %v650 = vpop.permute.xlu0 %649
      %vm652 = vcmask 523648
      %653 = vst.msk [vmem:[%s224] sm:$0xff] %vm652, %v650
      %v654 = vld [vmem:[#allocation3] sm:$0xff]
      %656 = vrot.lane.b32.xlu0 %v654, 120
      %v657 = vpop.permute.xlu0 %656
      %vm659 = vcmask 654848
      %660 = vst.msk [vmem:[%s224] sm:$0xff] %vm659, %v657
      %v661 = vld [vmem:[#allocation3] sm:$0xff]
      %663 = vrot.lane.b32.xlu0 %v661, 118
      %v664 = vpop.permute.xlu0 %663
      %vm666 = vcmask 786048
      %667 = vst.msk [vmem:[%s224] sm:$0xff] %vm666, %v664
      %v668 = vld [vmem:[#allocation3] sm:$0xff]
      %670 = vrot.lane.b32.xlu0 %v668, 116
      %v671 = vpop.permute.xlu0 %670
      %vm673 = vcmask 917248
      %674 = vst.msk [vmem:[%s224] sm:$0xff] %vm673, %v671
      %v675 = vld [vmem:[#allocation3] sm:$0xff]
      %v676 = vld [vmem:[#allocation3 + $0x8] sm:$0xff]
      %679 = vrot.lane.b32.xlu0 %v675, 114
      %v680 = vpop.permute.xlu0 %679
      %681 = vrot.lane.b32.xlu0 %v676, 114
      %v682 = vpop.permute.xlu0 %681
      %vm683 = vcmask 932864
      %v684 = vsel %vm683, %v680, %v682
      %vm686 = vcmask 1048448
      %687 = vst.msk [vmem:[%s224] sm:$0xff] %vm686, %v684
      %v688 = vld [vmem:[#allocation3 + $0x8] sm:$0xff]
      %690 = vrot.lane.b32.xlu0 %v688, 112
      %v691 = vpop.permute.xlu0 %690
      %693 = vst.msk [vmem:[%s224 + $0x8] sm:$0xff] %vm631, %v691
      %v694 = vld [vmem:[#allocation3 + $0x8] sm:$0xff]
      %696 = vrot.lane.b32.xlu0 %v694, 110
      %v697 = vpop.permute.xlu0 %696
      %699 = vst.msk [vmem:[%s224 + $0x8] sm:$0xff] %vm638, %v697
      %v700 = vld [vmem:[#allocation3 + $0x8] sm:$0xff]
      %702 = vrot.lane.b32.xlu0 %v700, 108
      %v703 = vpop.permute.xlu0 %702
      %705 = vst.msk [vmem:[%s224 + $0x8] sm:$0xff] %vm645, %v703
      %v706 = vld [vmem:[#allocation3 + $0x8] sm:$0xff]
      %708 = vrot.lane.b32.xlu0 %v706, 106
      %v709 = vpop.permute.xlu0 %708
      %711 = vst.msk [vmem:[%s224 + $0x8] sm:$0xff] %vm652, %v709
      %v712 = vld [vmem:[#allocation3 + $0x8] sm:$0xff]
      %714 = vrot.lane.b32.xlu0 %v712, 104
      %v715 = vpop.permute.xlu0 %714
      %717 = vst.msk [vmem:[%s224 + $0x8] sm:$0xff] %vm659, %v715
      %v718 = vld [vmem:[#allocation3 + $0x8] sm:$0xff]
      %720 = vrot.lane.b32.xlu0 %v718, 102
      %v721 = vpop.permute.xlu0 %720
      %723 = vst.msk [vmem:[%s224 + $0x8] sm:$0xff] %vm666, %v721
      %v724 = vld [vmem:[#allocation3 + $0x8] sm:$0xff]
      %v725 = vld [vmem:[#allocation3 + $0x10] sm:$0xff]
      %728 = vrot.lane.b32.xlu0 %v724, 100
      %v729 = vpop.permute.xlu0 %728
      %730 = vrot.lane.b32.xlu0 %v725, 100
      %v731 = vpop.permute.xlu0 %730
      %vm732 = vcmask 818176
      %v733 = vsel %vm732, %v729, %v731
      %735 = vst.msk [vmem:[%s224 + $0x8] sm:$0xff] %vm673, %v733
      %v736 = vld [vmem:[#allocation3 + $0x10] sm:$0xff]
      %738 = vrot.lane.b32.xlu0 %v736, 98
      %v739 = vpop.permute.xlu0 %738
      %741 = vst.msk [vmem:[%s224 + $0x8] sm:$0xff] %vm686, %v739
      %p742 = scmp.lt.s32.totalorder %s16, 1
      %s743 = scalar_select %p742, %s16, 1
      %s744 = smul.addr %s743, 2
      %s745 = smul.addr %s744, 8
      %s746 = scalar_lea.vmem %s5, %s745
      // Predicated region
      $region41: #{gated_block_pw.3} parent=39 // pred_check
        %p747 = pneg %p144
      $region42: #{gated_block_pw.3} parent=39 // pred_check_branch
        %749 = sbr.rel (%p747) target = $region44
      $region43: #{gated_block_pw.3} parent=39 // pred_region
        _
      $region44: #{gated_block_pw.3} parent=39 // pred_fallthru
        _
    $region40: #{gated_block_pw.3} parent=5 // pred_fallthru
      _
    %p750 = scmp.le.s32.totalorder 2, %s11
    // Predicated region
    $region45: #{gated_block_pw.3} parent=5 // pred_check
      %p751 = pneg %p750
    $region46: #{gated_block_pw.3} parent=5 // pred_check_branch
      %753 = sbr.rel (%p751) target = $region48
    $region47: #{gated_block_pw.3} parent=5 // pred_region
      %s754 = ssub.s32 %s11, 2
      // Predicated region
      $region49: #{gated_block_pw.3} parent=47 // pred_check
        %p755 = pneg %p150
      $region50: #{gated_block_pw.3} parent=47 // pred_check_branch
        %757 = sbr.rel (%p755) target = $region52
      $region51: #{gated_block_pw.3} parent=47 // pred_region
        %p758 = scmp.lt.s32.totalorder %s17, 1
        %s759 = scalar_select %p758, %s17, 1
        %s760 = smul.addr %s759, 2
        %s761 = smul.addr %s760, 8
        %s762 = scalar_lea.vmem %s5, %s761
      $region52: #{gated_block_pw.3} parent=47 // pred_fallthru
        _
    $region48: #{gated_block_pw.3} parent=5 // pred_fallthru
      _
  $region6: #{gated_block_pw.3} parent=0 // loop_footer
    %s15 = sadd.s32 1, %s11
  $region7: #{gated_block_pw.3} parent=0 // loop_footer_branch
    %10 = sbr.rel target = $region3
  $region8: #{gated_block_pw.3} parent=0 // loop_exit
    _

// kernel: gated_block_pw.2
$region0: #{gated_block_pw.2}
  #allocation0 [shape = 'u32[]', space=smem, size = 0x4, offset = 0x4, fixed_abs, tag = 'smem constant byte address 0x4 - core index']
  #allocation1 [shape = 'u32[144,128]{1,0:T(1,128)}', space=vmem, size = 0x12000, scoped, tag = 'internal scratch']
  #allocation2 [shape = 'f32[36,384]{1,0:T(8,128)}', space=vmem, size = 0xf000, scoped, tag = 'scratch operand']
  %s0 = inlined_call_operand.vmem [shape: f32[2,4,384], index: 0, kind: input, shape index: {}]
  %s1 = inlined_call_operand.vmem [shape: f32[16,36], index: 1, kind: input, shape index: {}]
  %s2 = inlined_call_operand.vmem [shape: f32[16,1], index: 2, kind: input, shape index: {}]
  %s3 = inlined_call_operand.vmem [shape: f32[1,384], index: 3, kind: input, shape index: {}]
  %s4 = inlined_call_operand.vmem [shape: f32[2,8,2], index: 4, kind: output, shape index: {}]
  %s5 = sld [smem:[#allocation0]]
  $region49: #{gated_block_pw.2} parent=0
    _
  %s7 = ssub.s32 1, %s5
  %s8 = scalar_select 0, %s7, %s5
  loop: start=0, step=1, limit=4
  $region2: #{gated_block_pw.2} parent=0 // loop_pre_header
    _
  $region3: #{gated_block_pw.2} parent=0 // loop_header
    %s10 = sphi 0, %s14
    %p11 = scmp.ge.s32.totalorder %s10, 4
    %s20 = sphi 0, %s22
    %s23 = sphi 0, %s20
    %s24 = sphi 0, %s23
    %s40 = sphi 0, %s24
    %s44 = sphi 0, %s44
    %s46 = sphi 0, %s44
    %s47 = sphi 0, %s46
    %s61 = sphi 0, %s47
    %s65 = sphi 0, %s65
    %s67 = sphi 0, %s65
    %s68 = sphi 0, %s67
    %s82 = sphi 0, %s68
    %s86 = sphi 0, %s86
    %s88 = sphi 0, %s86
    %s89 = sphi 0, %s88
    %s103 = sphi 0, %s89
    %s109 = sphi 0, %s111
    %s112 = sphi 0, %s109
    %s113 = sphi 0, %s112
    %s129 = sphi 0, %s113
  $region4: #{gated_block_pw.2} parent=0 // loop_header_branch
    %13 = sbr.rel (%p11) target = $region8
  $region5: #{gated_block_pw.2} parent=0 // loop_body
    %s15 = ssub.s32 %s10, 1
    %s16 = ssub.s32 %s10, 2
    %s17 = sadd.s32 %s10, 1
    %s18 = ssub.s32 %s10, %s17
    %p19 = scmp.eq.s32.totalorder %s18, 0
    %s21 = sadd.s32 %s20, 1
    %s22 = scalar_select %p19, %s20, %s21
    %p25 = pneg %p19
    %p26 = scmp.eq.s32.totalorder %s10, 1
    %p27 = por %p25, %p26
    %p28 = scmp.ne.s32.totalorder %s20, %s23
    %p29 = scmp.eq.s32.totalorder %s10, 0
    %p30 = por %p28, %p29
    %p31 = scmp.ne.s32.totalorder %s20, %s23
    %p32 = scmp.eq.s32.totalorder %s15, 1
    %p33 = por %p31, %p32
    %p34 = scmp.ne.s32.totalorder %s23, %s24
    %p35 = scmp.eq.s32.totalorder %s15, 0
    %p36 = por %p34, %p35
    %p37 = scmp.ne.s32.totalorder %s23, %s24
    %p38 = scmp.eq.s32.totalorder %s16, 1
    %p39 = por %p37, %p38
    %p41 = scmp.ne.s32.totalorder %s24, %s40
    %p42 = scmp.eq.s32.totalorder %s16, 0
    %p43 = por %p41, %p42
    %s45 = sadd.s32 %s44, 1
    %p48 = scmp.eq.s32.totalorder %s10, 1
    %p49 = scmp.ne.s32.totalorder %s44, %s46
    %p50 = scmp.eq.s32.totalorder %s10, 0
    %p51 = por %p49, %p50
    %p52 = scmp.ne.s32.totalorder %s44, %s46
    %p53 = scmp.eq.s32.totalorder %s15, 1
    %p54 = por %p52, %p53
    %p55 = scmp.ne.s32.totalorder %s46, %s47
    %p56 = scmp.eq.s32.totalorder %s15, 0
    %p57 = por %p55, %p56
    %p58 = scmp.ne.s32.totalorder %s46, %s47
    %p59 = scmp.eq.s32.totalorder %s16, 1
    %p60 = por %p58, %p59
    %p62 = scmp.ne.s32.totalorder %s47, %s61
    %p63 = scmp.eq.s32.totalorder %s16, 0
    %p64 = por %p62, %p63
    %s66 = sadd.s32 %s65, 1
    %p69 = scmp.eq.s32.totalorder %s10, 1
    %p70 = scmp.ne.s32.totalorder %s65, %s67
    %p71 = scmp.eq.s32.totalorder %s10, 0
    %p72 = por %p70, %p71
    %p73 = scmp.ne.s32.totalorder %s65, %s67
    %p74 = scmp.eq.s32.totalorder %s15, 1
    %p75 = por %p73, %p74
    %p76 = scmp.ne.s32.totalorder %s67, %s68
    %p77 = scmp.eq.s32.totalorder %s15, 0
    %p78 = por %p76, %p77
    %p79 = scmp.ne.s32.totalorder %s67, %s68
    %p80 = scmp.eq.s32.totalorder %s16, 1
    %p81 = por %p79, %p80
    %p83 = scmp.ne.s32.totalorder %s68, %s82
    %p84 = scmp.eq.s32.totalorder %s16, 0
    %p85 = por %p83, %p84
    %s87 = sadd.s32 %s86, 1
    %p90 = scmp.eq.s32.totalorder %s10, 1
    %p91 = scmp.ne.s32.totalorder %s86, %s88
    %p92 = scmp.eq.s32.totalorder %s10, 0
    %p93 = por %p91, %p92
    %p94 = scmp.ne.s32.totalorder %s86, %s88
    %p95 = scmp.eq.s32.totalorder %s15, 1
    %p96 = por %p94, %p95
    %p97 = scmp.ne.s32.totalorder %s88, %s89
    %p98 = scmp.eq.s32.totalorder %s15, 0
    %p99 = por %p97, %p98
    %p100 = scmp.ne.s32.totalorder %s88, %s89
    %p101 = scmp.eq.s32.totalorder %s16, 1
    %p102 = por %p100, %p101
    %p104 = scmp.ne.s32.totalorder %s89, %s103
    %p105 = scmp.eq.s32.totalorder %s16, 0
    %p106 = por %p104, %p105
    %s107 = ssub.s32 %s10, %s17
    %p108 = scmp.eq.s32.totalorder %s107, 0
    %s110 = sadd.s32 %s109, 1
    %s111 = scalar_select %p108, %s109, %s110
    %p114 = pneg %p108
    %p115 = scmp.eq.s32.totalorder %s10, 1
    %p116 = por %p114, %p115
    %p117 = scmp.ne.s32.totalorder %s109, %s112
    %p118 = scmp.eq.s32.totalorder %s10, 0
    %p119 = por %p117, %p118
    %p120 = scmp.ne.s32.totalorder %s109, %s112
    %p121 = scmp.eq.s32.totalorder %s15, 1
    %p122 = por %p120, %p121
    %p123 = scmp.ne.s32.totalorder %s112, %s113
    %p124 = scmp.eq.s32.totalorder %s15, 0
    %p125 = por %p123, %p124
    %p126 = scmp.ne.s32.totalorder %s112, %s113
    %p127 = scmp.eq.s32.totalorder %s16, 1
    %p128 = por %p126, %p127
    %p130 = scmp.ne.s32.totalorder %s113, %s129
    %p131 = scmp.eq.s32.totalorder %s16, 0
    %p132 = por %p130, %p131
    %p133 = scmp.le.s32.totalorder 1, %s10
    %p134 = scmp.lt.s32.totalorder %s10, 3
    %p135 = pnand %p133, %p134
    %p136 = pneg %p135
    // Predicated region
    $region9: #{gated_block_pw.2} parent=5 // pred_check
      _
    $region10: #{gated_block_pw.2} parent=5 // pred_check_branch
      %138 = sbr.rel (%p135) target = $region12
    $region11: #{gated_block_pw.2} parent=5 // pred_region
      %s139 = ssub.s32 %s10, 1
      // Predicated region
      $region13: #{gated_block_pw.2} parent=11 // pred_check
        %p140 = pneg %p57
      $region14: #{gated_block_pw.2} parent=11 // pred_check_branch
        %142 = sbr.rel (%p140) target = $region16
      $region15: #{gated_block_pw.2} parent=11 // pred_region
        _
      $region16: #{gated_block_pw.2} parent=11 // pred_fallthru
        _
      // Predicated region
      $region17: #{gated_block_pw.2} parent=11 // pred_check
        %p143 = pneg %p78
      $region18: #{gated_block_pw.2} parent=11 // pred_check_branch
        %145 = sbr.rel (%p143) target = $region20
      $region19: #{gated_block_pw.2} parent=11 // pred_region
        _
      $region20: #{gated_block_pw.2} parent=11 // pred_fallthru
        _
      // Predicated region
      $region21: #{gated_block_pw.2} parent=11 // pred_check
        %p146 = pneg %p99
      $region22: #{gated_block_pw.2} parent=11 // pred_check_branch
        %148 = sbr.rel (%p146) target = $region24
      $region23: #{gated_block_pw.2} parent=11 // pred_region
        _
      $region24: #{gated_block_pw.2} parent=11 // pred_fallthru
        _
    $region12: #{gated_block_pw.2} parent=5 // pred_fallthru
      _
    %p149 = scmp.lt.s32.totalorder %s10, 2
    // Predicated region
    $region25: #{gated_block_pw.2} parent=5 // pred_check
      %p150 = pneg %p149
    $region26: #{gated_block_pw.2} parent=5 // pred_check_branch
      %152 = sbr.rel (%p150) target = $region28
    $region27: #{gated_block_pw.2} parent=5 // pred_region
      // Predicated region
      $region29: #{gated_block_pw.2} parent=27 // pred_check
        %p153 = pneg %p30
      $region30: #{gated_block_pw.2} parent=27 // pred_check_branch
        %155 = sbr.rel (%p153) target = $region32
      $region31: #{gated_block_pw.2} parent=27 // pred_region
        %p156 = scmp.lt.s32.totalorder %s10, 1
        %s157 = scalar_select %p156, %s10, 1
        %s158 = smul.addr %s157, 3
        %s159 = smul.addr %s158, 4
        %s160 = scalar_lea.vmem %s0, %s159
      $region32: #{gated_block_pw.2} parent=27 // pred_fallthru
        _
    $region28: #{gated_block_pw.2} parent=5 // pred_fallthru
      _
    %p161 = scmp.le.s32.totalorder 1, %s10
    %p162 = scmp.lt.s32.totalorder %s10, 3
    %p163 = pnand %p161, %p162
    %p164 = pneg %p163
    // Predicated region
    $region33: #{gated_block_pw.2} parent=5 // pred_check
      _
    $region34: #{gated_block_pw.2} parent=5 // pred_check_branch
      %166 = sbr.rel (%p163) target = $region36
    $region35: #{gated_block_pw.2} parent=5 // pred_region
      %s167 = ssub.s32 %s10, 1
      %p168 = scmp.lt.s32.totalorder %s15, 1
      %s169 = scalar_select %p168, %s15, 1
      %s170 = smul.addr %s169, 3
      %s171 = smul.addr %s170, 4
      %s172 = scalar_lea.vmem %s0, %s171
      %p173 = pneg %p36
      %p174 = pneg %p33
      %p175 = pneg %p57
      %p176 = pneg %p54
      %p177 = pneg %p78
      %p178 = pneg %p75
      %p179 = pneg %p99
      %p180 = pneg %p96
      %p181 = pneg %p125
      %p182 = pneg %p122
      %p183 = scmp.lt.s32.totalorder %s15, 1
      %s184 = scalar_select %p183, %s15, 1
      %s185 = smul.addr %s184, 8
      %s186 = scalar_lea.vmem %s4, %s185
      %p187 = scmp.lt.s32.totalorder %s15, 1
      %s188 = scalar_select %p187, %s15, 1
      %s189 = smul.addr %s188, 3
      %s190 = smul.addr %s189, 4
      %s191 = scalar_lea.vmem %s0, %s190
      %p192 = scmp.lt.s32.totalorder %s15, 1
      %s193 = scalar_select %p192, %s15, 1
      %s194 = smul.addr %s193, 8
      %s195 = scalar_lea.vmem %s4, %s194
      %v196 = vld [vmem:[%s1] sm:$0xff]
      %v197 = vld [vmem:[%s1 + $0x8] sm:$0xff]
      %v198 = vld [vmem:[%s2] sm:$0xff]
      %v199 = vld [vmem:[%s2 + $0x8] sm:$0xff]
      %v200 = vld [vmem:[%s3] sm:$0x7]
      %v201 = vld [vmem:[%s191] sm:$0xff]
      %v202 = vld [vmem:[%s191 + $0x8] sm:$0xf]
      %v204 = vcombine.high %v201, %v201
      %206 = vst [vmem:[#allocation2] sm:$0xf] %v201
      %207 = vst [vmem:[#allocation2 + $0x8] sm:$0xf] %v204
      %208 = vst [vmem:[#allocation2 + $0x10] sm:$0xf] %v202
      %209 = vrot.lane.b32.xlu0 %v201, 127
      %v210 = vpop.permute.xlu0 %209
      %211 = vrot.lane.b32.xlu0 %v204, 127
      %v212 = vpop.permute.xlu0 %211
      %213 = vrot.lane.b32.xlu0 %v202, 127
      %v214 = vpop.permute.xlu0 %213
      %v215 = vlaneseq
      %v216 = vand.u32 %v215, 127
      %vm217 = vcmp.lt.s32.totalorder %v216, 127
      %v218 = vsel %vm217, %v212, %v214
      %v219 = vsel %vm217, %v210, %v212
      %v220 = vsel %vm217, %v214, %v210
      %v224 = vrot.slane %v219, 4
      %v225 = vrot.slane %v218, 4
      %v226 = vrot.slane %v220, 4
      %230 = vst [vmem:[#allocation2] sm:$0xf0] %v224
      %231 = vst [vmem:[#allocation2 + $0x8] sm:$0xf0] %v225
      %232 = vst [vmem:[#allocation2 + $0x10] sm:$0xf0] %v226
      %233 = vrot.lane.b32.xlu0 %v201, 126
      %v234 = vpop.permute.xlu0 %233
      %235 = vrot.lane.b32.xlu0 %v204, 126
      %v236 = vpop.permute.xlu0 %235
      %237 = vrot.lane.b32.xlu0 %v202, 126
      %v238 = vpop.permute.xlu0 %237
      %vm239 = vcmp.lt.s32.totalorder %v216, 126
      %v240 = vsel %vm239, %v236, %v238
      %v241 = vsel %vm239, %v234, %v236
      %v242 = vsel %vm239, %v238, %v234
      %243 = vst [vmem:[#allocation2 + $0x18] sm:$0xf] %v241
      %244 = vst [vmem:[#allocation2 + $0x20] sm:$0xf] %v240
      %245 = vst [vmem:[#allocation2 + $0x28] sm:$0xf] %v242
      %246 = vrot.lane.b32.xlu0 %v201, 110
      %v247 = vpop.permute.xlu0 %246
      %248 = vrot.lane.b32.xlu0 %v204, 110
      %v249 = vpop.permute.xlu0 %248
      %250 = vrot.lane.b32.xlu0 %v202, 110
      %v251 = vpop.permute.xlu0 %250
      %vm252 = vcmp.lt.s32.totalorder %v216, 110
      %v253 = vsel %vm252, %v249, %v251
      %v254 = vsel %vm252, %v247, %v249
      %v255 = vsel %vm252, %v251, %v247
      %v259 = vrot.slane %v254, 4
      %v260 = vrot.slane %v253, 4
      %v261 = vrot.slane %v255, 4
      %265 = vst [vmem:[#allocation2 + $0x18] sm:$0xf0] %v259
      %266 = vst [vmem:[#allocation2 + $0x20] sm:$0xf0] %v260
      %267 = vst [vmem:[#allocation2 + $0x28] sm:$0xf0] %v261
      %268 = vrot.lane.b32.xlu0 %v201, 109
      %v269 = vpop.permute.xlu0 %268
      %270 = vrot.lane.b32.xlu0 %v204, 109
      %v271 = vpop.permute.xlu0 %270
      %272 = vrot.lane.b32.xlu0 %v202, 109
      %v273 = vpop.permute.xlu0 %272
      %vm274 = vcmp.lt.s32.totalorder %v216, 109
      %v275 = vsel %vm274, %v271, %v273
      %v276 = vsel %vm274, %v269, %v271
      %v277 = vsel %vm274, %v273, %v269
      %278 = vst [vmem:[#allocation2 + $0x30] sm:$0xf] %v276
      %279 = vst [vmem:[#allocation2 + $0x38] sm:$0xf] %v275
      %280 = vst [vmem:[#allocation2 + $0x40] sm:$0xf] %v277
      %281 = vrot.lane.b32.xlu0 %v201, 108
      %v282 = vpop.permute.xlu0 %281
      %283 = vrot.lane.b32.xlu0 %v204, 108
      %v284 = vpop.permute.xlu0 %283
      %285 = vrot.lane.b32.xlu0 %v202, 108
      %v286 = vpop.permute.xlu0 %285
      %vm287 = vcmp.lt.s32.totalorder %v216, 108
      %v288 = vsel %vm287, %v284, %v286
      %v289 = vsel %vm287, %v282, %v284
      %v290 = vsel %vm287, %v286, %v282
      %v294 = vrot.slane %v289, 4
      %v295 = vrot.slane %v288, 4
      %v296 = vrot.slane %v290, 4
      %300 = vst [vmem:[#allocation2 + $0x30] sm:$0xf0] %v294
      %301 = vst [vmem:[#allocation2 + $0x38] sm:$0xf0] %v295
      %302 = vst [vmem:[#allocation2 + $0x40] sm:$0xf0] %v296
      %303 = vrot.lane.b32.xlu0 %v201, 92
      %v304 = vpop.permute.xlu0 %303
      %305 = vrot.lane.b32.xlu0 %v204, 92
      %v306 = vpop.permute.xlu0 %305
      %307 = vrot.lane.b32.xlu0 %v202, 92
      %v308 = vpop.permute.xlu0 %307
      %vm309 = vcmp.lt.s32.totalorder %v216, 92
      %v310 = vsel %vm309, %v306, %v308
      %v311 = vsel %vm309, %v304, %v306
      %v312 = vsel %vm309, %v308, %v304
      %313 = vst [vmem:[#allocation2 + $0x48] sm:$0xf] %v311
      %314 = vst [vmem:[#allocation2 + $0x50] sm:$0xf] %v310
      %315 = vst [vmem:[#allocation2 + $0x58] sm:$0xf] %v312
      %316 = vrot.lane.b32.xlu0 %v201, 91
      %v317 = vpop.permute.xlu0 %316
      %318 = vrot.lane.b32.xlu0 %v204, 91
      %v319 = vpop.permute.xlu0 %318
      %320 = vrot.lane.b32.xlu0 %v202, 91
      %v321 = vpop.permute.xlu0 %320
      %vm322 = vcmp.lt.s32.totalorder %v216, 91
      %v323 = vsel %vm322, %v319, %v321
      %v324 = vsel %vm322, %v317, %v319
      %v325 = vsel %vm322, %v321, %v317
      %v329 = vrot.slane %v324, 4
      %v330 = vrot.slane %v323, 4
      %v331 = vrot.slane %v325, 4
      %335 = vst [vmem:[#allocation2 + $0x48] sm:$0xf0] %v329
      %336 = vst [vmem:[#allocation2 + $0x50] sm:$0xf0] %v330
      %337 = vst [vmem:[#allocation2 + $0x58] sm:$0xf0] %v331
      %338 = vrot.lane.b32.xlu0 %v201, 90
      %v339 = vpop.permute.xlu0 %338
      %340 = vrot.lane.b32.xlu0 %v204, 90
      %v341 = vpop.permute.xlu0 %340
      %342 = vrot.lane.b32.xlu0 %v202, 90
      %v343 = vpop.permute.xlu0 %342
      %vm344 = vcmp.lt.s32.totalorder %v216, 90
      %v345 = vsel %vm344, %v341, %v343
      %v346 = vsel %vm344, %v339, %v341
      %v347 = vsel %vm344, %v343, %v339
      %348 = vst [vmem:[#allocation2 + $0x60] sm:$0xf] %v346
      %349 = vst [vmem:[#allocation2 + $0x68] sm:$0xf] %v345
      %350 = vst [vmem:[#allocation2 + $0x70] sm:$0xf] %v347
      %v351 = vld [vmem:[#allocation2] sm:$0xff]
      %v352 = vld [vmem:[#allocation2 + $0x8] sm:$0xff]
      %v353 = vld [vmem:[#allocation2 + $0x10] sm:$0xff]
      %v354 = vld [vmem:[#allocation2 + $0x18] sm:$0xff]
      %v355 = vld [vmem:[#allocation2 + $0x20] sm:$0xff]
      %v356 = vld [vmem:[#allocation2 + $0x28] sm:$0xff]
      %v357 = vld [vmem:[#allocation2 + $0x30] sm:$0xff]
      %v358 = vld [vmem:[#allocation2 + $0x38] sm:$0xff]
      %v359 = vld [vmem:[#allocation2 + $0x40] sm:$0xff]
      %v360 = vld [vmem:[#allocation2 + $0x48] sm:$0xff]
      %v361 = vld [vmem:[#allocation2 + $0x50] sm:$0xff]
      %v362 = vld [vmem:[#allocation2 + $0x58] sm:$0xff]
      %v363 = vld [vmem:[#allocation2 + $0x60] sm:$0xf]
      %v364 = vld [vmem:[#allocation2 + $0x68] sm:$0xf]
      %v365 = vld [vmem:[#allocation2 + $0x70] sm:$0xf]
      %367 = vset.pattern.permute.xlu0 0
      %368 = vperm.xlu0 %367, %v198
      %v369 = vpop.permute.xlu0 %368
      %372 = vset.pattern.permute.xlu0 0
      %373 = vperm.xlu0 %372, %v199
      %v374 = vpop.permute.xlu0 %373
      %vm376 = vcmask 293888
      %v378 = vsel %vm376, %v196, 0
      %v381 = vsel %vm376, %v197, 0
      %vm383 = vcmask 1043456
      %v385 = vsel %vm383, %v363, 0
      %v388 = vsel %vm383, %v364, 0
      %v391 = vsel %vm383, %v365, 0
      %393 = vmatprep.subr.mxu0 0.0
      %394 = vmatpush1.msra.mxu0 0.0
      %395 = vmatprep.subr.mxu0 0.0
      %396 = vmatpush1.msra.mxu0 0.0
      %397 = vmatprep.subr.mxu0 0.0
      %398 = vmatpush1.msra.mxu0 0.0
      %399 = vmatprep.subr.mxu0 0.0
      %400 = vmatpush1.msra.mxu0 0.0
      %401 = vmatprep.subr.mxu0 0.0
      %402 = vmatpush1.msra.mxu0 0.0
      %403 = vmatprep.subr.mxu0 0.0
      %404 = vmatpush1.msra.mxu0 0.0
      %405 = vmatprep.subr.mxu0 0.0
      %406 = vmatpush1.msra.mxu0 0.0
      %407 = vmatprep.subr.mxu0 0.0
      %408 = vmatpush1.msra.mxu0 0.0
      %409 = vmatprep.subr.mxu0 0.0
      %410 = vmatpush1.msra.mxu0 0.0
      %411 = vmatprep.subr.mxu0 0.0
      %412 = vmatpush1.msra.mxu0 0.0
      %413 = vmatprep.subr.mxu0 0.0
      %414 = vmatpush1.msra.mxu0 0.0
      %415 = vmatprep.subr.mxu0 %v388
      %416 = vmatpush1.msra.mxu0 %v385
      %417 = vmatprep.subr.mxu0 %v361
      %418 = vmatpush1.msra.mxu0 %v360
      %419 = vmatprep.subr.mxu0 %v358
      %420 = vmatpush1.msra.mxu0 %v357
      %421 = vmatprep.subr.mxu0 %v355
      %422 = vmatpush1.msra.mxu0 %v354
      %423 = vmatprep.subr.mxu0 %v352
      %424 = vmatpush1.msra.mxu0 %v351
      %425 = vmatprep.subr.mxu0 0.0
      %426 = vmatpush2.msra.mxu0 0.0
      %427 = vmatprep.subr.mxu0 0.0
      %428 = vmatpush2.msra.mxu0 0.0
      %429 = vmatprep.subr.mxu0 0.0
      %430 = vmatpush2.msra.mxu0 0.0
      %431 = vmatprep.subr.mxu0 0.0
      %432 = vmatpush2.msra.mxu0 0.0
      %433 = vmatprep.subr.mxu0 0.0
      %434 = vmatpush2.msra.mxu0 0.0
      %435 = vmatprep.subr.mxu0 0.0
      %436 = vmatpush2.msra.mxu0 0.0
      %437 = vmatprep.subr.mxu0 0.0
      %438 = vmatpush2.msra.mxu0 0.0
      %439 = vmatprep.subr.mxu0 0.0
      %440 = vmatpush2.msra.mxu0 0.0
      %441 = vmatprep.subr.mxu0 0.0
      %442 = vmatpush2.msra.mxu0 0.0
      %443 = vmatprep.subr.mxu0 0.0
      %444 = vmatpush2.msra.mxu0 0.0
      %445 = vmatprep.subr.mxu0 0.0
      %446 = vmatpush2.msra.mxu0 0.0
      %447 = vmatprep.subr.mxu0 0.0
      %448 = vmatpush2.msra.mxu0 0.0
      %449 = vmatprep.subr.mxu0 0.0
      %450 = vmatpush2.msra.mxu0 0.0
      %451 = vmatprep.subr.mxu0 0.0
      %452 = vmatpush2.msra.mxu0 0.0
      %453 = vmatprep.subr.mxu0 0.0
      %454 = vmatpush2.msra.mxu0 0.0
      %455 = vmatprep.subr.mxu0 0.0
      %456 = vmatpush2.msra.mxu0 0.0
      %457 = vmatprep.mubr.f32.mxu0 0.0
      %458 = vmatmul.mubr.f32.gmra.mxu0 %v378
      %v459 = vpop.f32.mrf.mxu0
      %v460 = vadd.f32 %v369, %v459
      %v461 = vpop.f32.mrf.mxu0
      %v462 = vadd.f32 %v369, %v461
      %463 = vmatprep.mubr.f32.mxu0 0.0
      %464 = vmatmul.mubr.f32.gmra.mxu0 %v381
      %v465 = vpop.f32.mrf.mxu0
      %v466 = vadd.f32 %v374, %v465
      %v467 = vpop.f32.mrf.mxu0
      %v468 = vadd.f32 %v374, %v467
      %469 = vdwg.mxu0
      %470 = vmatprep.subr.mxu0 0.0
      %471 = vmatpush1.msra.mxu0 0.0
      %472 = vmatprep.subr.mxu0 0.0
      %473 = vmatpush1.msra.mxu0 0.0
      %474 = vmatprep.subr.mxu0 0.0
      %475 = vmatpush1.msra.mxu0 0.0
      %476 = vmatprep.subr.mxu0 0.0
      %477 = vmatpush1.msra.mxu0 0.0
      %478 = vmatprep.subr.mxu0 0.0
      %479 = vmatpush1.msra.mxu0 0.0
      %480 = vmatprep.subr.mxu0 0.0
      %481 = vmatpush1.msra.mxu0 0.0
      %482 = vmatprep.subr.mxu0 0.0
      %483 = vmatpush1.msra.mxu0 0.0
      %484 = vmatprep.subr.mxu0 0.0
      %485 = vmatpush1.msra.mxu0 0.0
      %486 = vmatprep.subr.mxu0 0.0
      %487 = vmatpush1.msra.mxu0 0.0
      %488 = vmatprep.subr.mxu0 0.0
      %489 = vmatpush1.msra.mxu0 0.0
      %490 = vmatprep.subr.mxu0 0.0
      %491 = vmatpush1.msra.mxu0 0.0
      %492 = vmatprep.subr.mxu0 0.0
      %493 = vmatpush1.msra.mxu0 %v391
      %494 = vmatprep.subr.mxu0 0.0
      %495 = vmatpush1.msra.mxu0 %v362
      %496 = vmatprep.subr.mxu0 0.0
      %497 = vmatpush1.msra.mxu0 %v359
      %498 = vmatprep.subr.mxu0 0.0
      %499 = vmatpush1.msra.mxu0 %v356
      %500 = vmatprep.subr.mxu0 0.0
      %501 = vmatpush1.msra.mxu0 %v353
      %502 = vmatprep.subr.mxu0 0.0
      %503 = vmatpush2.msra.mxu0 0.0
      %504 = vmatprep.subr.mxu0 0.0
      %505 = vmatpush2.msra.mxu0 0.0
      %506 = vmatprep.subr.mxu0 0.0
      %507 = vmatpush2.msra.mxu0 0.0
      %508 = vmatprep.subr.mxu0 0.0
      %509 = vmatpush2.msra.mxu0 0.0
      %510 = vmatprep.subr.mxu0 0.0
      %511 = vmatpush2.msra.mxu0 0.0
      %512 = vmatprep.subr.mxu0 0.0
      %513 = vmatpush2.msra.mxu0 0.0
      %514 = vmatprep.subr.mxu0 0.0
      %515 = vmatpush2.msra.mxu0 0.0
      %516 = vmatprep.subr.mxu0 0.0
      %517 = vmatpush2.msra.mxu0 0.0
      %518 = vmatprep.subr.mxu0 0.0
      %519 = vmatpush2.msra.mxu0 0.0
      %520 = vmatprep.subr.mxu0 0.0
      %521 = vmatpush2.msra.mxu0 0.0
      %522 = vmatprep.subr.mxu0 0.0
      %523 = vmatpush2.msra.mxu0 0.0
      %524 = vmatprep.subr.mxu0 0.0
      %525 = vmatpush2.msra.mxu0 0.0
      %526 = vmatprep.subr.mxu0 0.0
      %527 = vmatpush2.msra.mxu0 0.0
      %528 = vmatprep.subr.mxu0 0.0
      %529 = vmatpush2.msra.mxu0 0.0
      %530 = vmatprep.subr.mxu0 0.0
      %531 = vmatpush2.msra.mxu0 0.0
      %532 = vmatprep.subr.mxu0 0.0
      %533 = vmatpush2.msra.mxu0 0.0
      %534 = vmatprep.mubr.f32.mxu0 0.0
      %535 = vmatmul.mubr.f32.gmra.mxu0 %v378
      %v536 = vpop.f32.mrf.mxu0
      %v537 = vadd.f32 %v369, %v536
      %v538 = vpop.f32.mrf.mxu0
      %539 = vmatprep.mubr.f32.mxu0 0.0
      %540 = vmatmul.mubr.f32.gmra.mxu0 %v381
      %v541 = vpop.f32.mrf.mxu0
      %v542 = vadd.f32 %v374, %v541
      %v543 = vpop.f32.mrf.mxu0
      %544 = vdwg.mxu0
      %vm545 = vcmp.gt.f32.partialorder %v460, 0.0
      %vm546 = vcmp.gt.f32.partialorder %v462, 0.0
      %vm547 = vcmp.gt.f32.partialorder %v537, 0.0
      %v548 = vmin.f32 %v460, 0.0
      %v549 = vmin.f32 %v462, 0.0
      %v550 = vmin.f32 %v537, 0.0
      %v551 = vmul.f32 %v548, 1.442695
      %v552 = vpow.pop %v551
      %v553 = vmul.f32 %v549, 1.442695
      %v554 = vpow.pop %v553
      %v555 = vmul.f32 %v550, 1.442695
      %v556 = vpow.pop %v555
      %v557 = vsub.f32 %v552, 1.0
      %v558 = vsub.f32 %v554, 1.0
      %v559 = vsub.f32 %v556, 1.0
      %v560 = vsel %vm545, %v460, %v557
      %v561 = vsel %vm546, %v462, %v558
      %v562 = vsel %vm547, %v537, %v559
      %v563 = vsub.f32 0.0, %v466
      %v564 = vsub.f32 0.0, %v468
      %v565 = vsub.f32 0.0, %v542
      %v566 = vmul.f32 %v563, 1.442695
      %v567 = vpow.pop %v566
      %v568 = vmul.f32 %v564, 1.442695
      %v569 = vpow.pop %v568
      %v570 = vmul.f32 %v565, 1.442695
      %v571 = vpow.pop %v570
      %v572 = vadd.f32 %v567, 1.0
      %v573 = vadd.f32 %v569, 1.0
      %v574 = vadd.f32 %v571, 1.0
      %v575 = vrcp.pop %v572
      %v576 = vrcp.pop %v573
      %v577 = vrcp.pop %v574
      %v578 = vmul.f32 %v560, %v575
      %v579 = vmul.f32 %v561, %v576
      %v580 = vmul.f32 %v562, %v577
      %v582 = vlaneseq
      %v583 = vshrl.u32 %v582, 7
      %v584 = vsub.s32 0, %v583
      %v585 = vrot.slane %v200, %v584
      %v586 = vlaneseq
      %v587 = vshrl.u32 %v586, 7
      %v588 = vsub.s32 1, %v587
      %v589 = vrot.slane %v200, %v588
      %v590 = vlaneseq
      %v591 = vshrl.u32 %v590, 7
      %v592 = vsub.s32 2, %v591
      %v593 = vrot.slane %v200, %v592
      %v597 = vmul.f32 %v578, %v585
      %v598 = vmul.f32 %v579, %v589
      %v599 = vmul.f32 %v580, %v593
      %v600 = vadd.f32 %v597, %v598
      %v601 = vadd.f32 %v600, %v599
      %602 = vadd.xlane.f32.xlu0 %v601
      %v603 = vpop.xlane.xlu0 %602
      %vm604 = vcmask 7168
      %605 = vst.msk [vmem:[%s195] sm:$0xff] %vm604, %v603
      %v606 = vmul.f32 %v597, %v597
      %v607 = vmul.f32 %v598, %v598
      %v608 = vmul.f32 %v599, %v599
      %v609 = vadd.f32 %v606, %v607
      %v610 = vadd.f32 %v609, %v608
      %611 = vadd.xlane.f32.xlu0 %v610
      %v612 = vpop.xlane.xlu0 %611
      %vm613 = vcmask 15368
      %614 = vst.msk [vmem:[%s195] sm:$0xff] %vm613, %v612
      %p615 = scmp.lt.s32.totalorder %s15, 1
      %s616 = scalar_select %p615, %s15, 1
      %s617 = smul.addr %s616, 8
      %s618 = scalar_lea.vmem %s4, %s617
      // Predicated region
      $region37: #{gated_block_pw.2} parent=35 // pred_check
        %p619 = pneg %p122
      $region38: #{gated_block_pw.2} parent=35 // pred_check_branch
        %621 = sbr.rel (%p619) target = $region40
      $region39: #{gated_block_pw.2} parent=35 // pred_region
        _
      $region40: #{gated_block_pw.2} parent=35 // pred_fallthru
        _
    $region36: #{gated_block_pw.2} parent=5 // pred_fallthru
      _
    %p622 = scmp.le.s32.totalorder 2, %s10
    // Predicated region
    $region41: #{gated_block_pw.2} parent=5 // pred_check
      %p623 = pneg %p622
    $region42: #{gated_block_pw.2} parent=5 // pred_check_branch
      %625 = sbr.rel (%p623) target = $region44
    $region43: #{gated_block_pw.2} parent=5 // pred_region
      %s626 = ssub.s32 %s10, 2
      // Predicated region
      $region45: #{gated_block_pw.2} parent=43 // pred_check
        %p627 = pneg %p128
      $region46: #{gated_block_pw.2} parent=43 // pred_check_branch
        %629 = sbr.rel (%p627) target = $region48
      $region47: #{gated_block_pw.2} parent=43 // pred_region
        %p630 = scmp.lt.s32.totalorder %s16, 1
        %s631 = scalar_select %p630, %s16, 1
        %s632 = smul.addr %s631, 8
        %s633 = scalar_lea.vmem %s4, %s632
      $region48: #{gated_block_pw.2} parent=43 // pred_fallthru
        _
    $region44: #{gated_block_pw.2} parent=5 // pred_fallthru
      _
  $region6: #{gated_block_pw.2} parent=0 // loop_footer
    %s14 = sadd.s32 1, %s10
  $region7: #{gated_block_pw.2} parent=0 // loop_footer_branch
    %9 = sbr.rel target = $region3
  $region8: #{gated_block_pw.2} parent=0 // loop_exit
    _

</llo_original>
